<compile_context>
chip_gen: v7x
topology: tpu7x:2x2x1
jax: 0.10.0
libtpu: 0.0.40
codegen_flags: <defaults>
</compile_context>

<pallas_src>
import functools

import jax
import jax.numpy as jnp
from jax.experimental import pallas as pl
from jax.experimental.pallas import tpu as pltpu


# ----------------------- small helpers -----------------------

def _rup(x, m=128):
    return ((x + m - 1) // m) * m


def _pad_last(a, target):
    pad = target - a.shape[-1]
    if pad == 0:
        return a
    widths = [(0, 0)] * (a.ndim - 1) + [(0, pad)]
    return jnp.pad(a, widths)


def _sublane_tile(dim, target):
    """Largest multiple-of-8 divisor of dim that is <= target (or full dim)."""
    if dim <= target:
        return dim
    t = (target // 8) * 8
    while t >= 8:
        if dim % t == 0:
            return t
        t -= 8
    return dim


def _lane_tile(dim, target):
    """Largest multiple-of-128 divisor of dim that is <= target (or full dim)."""
    if dim <= target:
        return dim
    t = (target // 128) * 128
    while t >= 128:
        if dim % t == 0:
            return t
        t -= 128
    return dim


# ----------------------- Pallas kernels -----------------------

def _bn_if_kernel(scale_ref, shift_ref, x_ref, o_ref, u_ref):
    """Inference BN + IF neuron; membrane carried in VMEM scratch over T."""
    t = pl.program_id(2)
    y = x_ref[...] * scale_ref[...] + shift_ref[...]
    u = jnp.where(t == 0, 0.0, u_ref[...]) + y
    spike = (u >= 1.0).astype(jnp.float32)
    u_ref[...] = u - spike                      # soft reset
    o_ref[...] = spike.astype(o_ref.dtype)


def _mm_bn_if_kernel(scale_ref, shift_ref, a_ref, w_ref, o_ref, acc_ref, u_ref):
    """1x1 conv as tiled matmul, fused BN + IF epilogue (membrane over T)."""
    t = pl.program_id(2)
    k = pl.program_id(3)

    @pl.when(k == 0)
    def _():
        acc_ref[...] = jnp.zeros_like(acc_ref)

    acc_ref[...] += jnp.dot(a_ref[...], w_ref[...],
                            preferred_element_type=jnp.float32)

    @pl.when(k == pl.num_programs(3) - 1)
    def _():
        y = acc_ref[...] * scale_ref[...] + shift_ref[...]
        u = jnp.where(t == 0, 0.0, u_ref[...]) + y
        spike = (u >= 1.0).astype(jnp.float32)
        u_ref[...] = u - spike
        o_ref[...] = spike.astype(o_ref.dtype)


def _conv3x3_bn_if_kernel(scale_ref, shift_ref, x_ref, w_ref, o_ref, u_ref, *, wp):
    """3x3 conv (pad 1, stride 1) as 9 shifted matmuls on a flattened padded
    spatial layout, fused BN + IF epilogue.  One (batch, timestep) per step."""
    t = pl.program_id(1)
    lout, n = o_ref.shape
    acc = jnp.zeros((lout, n), jnp.float32)
    for kh in range(3):
        for kw in range(3):
            off = kh * wp + kw                       # static offset
            win = x_ref[off:off + lout, :]           # (lout, Cin) bf16
            acc = acc + jnp.dot(win, w_ref[kh, kw],
                                preferred_element_type=jnp.float32)
    y = acc * scale_ref[...] + shift_ref[...]
    u = jnp.where(t == 0, 0.0, u_ref[...]) + y
    spike = (u >= 1.0).astype(jnp.float32)
    u_ref[...] = u - spike
    o_ref[...] = spike.astype(o_ref.dtype)


def _mm_add_kernel(a_ref, w_ref, r_ref, o_ref, acc_ref):
    """1x1 conv as tiled matmul, fused residual add."""
    k = pl.program_id(2)

    @pl.when(k == 0)
    def _():
        acc_ref[...] = jnp.zeros_like(acc_ref)

    acc_ref[...] += jnp.dot(a_ref[...], w_ref[...],
                            preferred_element_type=jnp.float32)

    @pl.when(k == pl.num_programs(2) - 1)
    def _():
        o_ref[...] = acc_ref[...] + r_ref[...].astype(jnp.float32)


# ----------------------- pallas_call wrappers -----------------------

def bn_if(x_tmc, scale, shift):
    """x_tmc: (T, M, C) f32; scale/shift: (C,) folded BN params -> (T,M,C) bf16 spikes."""
    T, M, C = x_tmc.shape
    TM = _sublane_tile(M, 512)
    TC = _lane_tile(C, 512)
    return pl.pallas_call(
        _bn_if_kernel,
        out_shape=jax.ShapeDtypeStruct((T, M, C), jnp.bfloat16),
        grid_spec=pltpu.PrefetchScalarGridSpec(
            num_scalar_prefetch=0,
            grid=(M // TM, C // TC, T),
            in_specs=[
                pl.BlockSpec((1, TC), lambda i, j, t: (0, j)),
                pl.BlockSpec((1, TC), lambda i, j, t: (0, j)),
                pl.BlockSpec((None, TM, TC), lambda i, j, t: (t, i, j)),
            ],
            out_specs=pl.BlockSpec((None, TM, TC), lambda i, j, t: (t, i, j)),
            scratch_shapes=[pltpu.VMEM((TM, TC), jnp.float32)],
        ),
        compiler_params=pltpu.CompilerParams(
            dimension_semantics=("parallel", "parallel", "arbitrary")),
    )(scale.reshape(1, C), shift.reshape(1, C), x_tmc)


def conv1x1_bn_if(s, w, scale, shift):
    """s: (T, M, K) bf16 spikes; w: (K, N) bf16 -> (T, M, N) bf16 spikes."""
    T, M, K = s.shape
    N = w.shape[1]
    TM = _sublane_tile(M, 512)
    TN = _lane_tile(N, 256)
    TK = _lane_tile(K, 512)
    return pl.pallas_call(
        _mm_bn_if_kernel,
        out_shape=jax.ShapeDtypeStruct((T, M, N), jnp.bfloat16),
        grid_spec=pltpu.PrefetchScalarGridSpec(
            num_scalar_prefetch=0,
            grid=(M // TM, N // TN, T, K // TK),
            in_specs=[
                pl.BlockSpec((1, TN), lambda i, j, t, k: (0, j)),
                pl.BlockSpec((1, TN), lambda i, j, t, k: (0, j)),
                pl.BlockSpec((None, TM, TK), lambda i, j, t, k: (t, i, k)),
                pl.BlockSpec((TK, TN), lambda i, j, t, k: (k, j)),  # W resident over M,T
            ],
            out_specs=pl.BlockSpec((None, TM, TN), lambda i, j, t, k: (t, i, j)),
            scratch_shapes=[pltpu.VMEM((TM, TN), jnp.float32),   # matmul acc
                            pltpu.VMEM((TM, TN), jnp.float32)],  # IF membrane
        ),
        compiler_params=pltpu.CompilerParams(
            dimension_semantics=("parallel", "parallel", "arbitrary", "arbitrary")),
    )(scale.reshape(1, N), shift.reshape(1, N), s, w)


def conv3x3_bn_if(s2_flat, w2, scale, shift, H, W):
    """s2_flat: (T, B, (H+3)*(W+2), C) bf16 (spatially zero-padded, flattened);
    w2: (3,3,C,N) bf16.  Returns (T, B, H*(W+2), N) bf16 (2 junk cols/row)."""
    T, B, Lin, C = s2_flat.shape
    N = w2.shape[-1]
    Wp = W + 2
    Lout = H * Wp
    kern = functools.partial(_conv3x3_bn_if_kernel, wp=Wp)
    return pl.pallas_call(
        kern,
        out_shape=jax.ShapeDtypeStruct((T, B, Lout, N), jnp.bfloat16),
        grid_spec=pltpu.PrefetchScalarGridSpec(
            num_scalar_prefetch=0,
            grid=(B, T),
            in_specs=[
                pl.BlockSpec((1, N), lambda b, t: (0, 0)),
                pl.BlockSpec((1, N), lambda b, t: (0, 0)),
                pl.BlockSpec((None, None, Lin, C), lambda b, t: (t, b, 0, 0)),
                pl.BlockSpec((3, 3, C, N), lambda b, t: (0, 0, 0, 0)),  # taps resident
            ],
            out_specs=pl.BlockSpec((None, None, Lout, N), lambda b, t: (t, b, 0, 0)),
            scratch_shapes=[pltpu.VMEM((Lout, N), jnp.float32)],  # IF membrane
        ),
        compiler_params=pltpu.CompilerParams(
            dimension_semantics=("parallel", "arbitrary")),
    )(scale.reshape(1, N), shift.reshape(1, N), s2_flat, w2)


def conv1x1_add(s, w, r):
    """s: (M2, K) bf16 spikes; w: (K, N) bf16; r: (M2, N) bf16 residual -> (M2, N) f32."""
    M2, K = s.shape
    N = w.shape[1]
    TM = _sublane_tile(M2, 512)
    TN = _lane_tile(N, 256)
    TK = _lane_tile(K, 512)
    return pl.pallas_call(
        _mm_add_kernel,
        out_shape=jax.ShapeDtypeStruct((M2, N), jnp.float32),
        grid_spec=pltpu.PrefetchScalarGridSpec(
            num_scalar_prefetch=0,
            grid=(M2 // TM, N // TN, K // TK),
            in_specs=[
                pl.BlockSpec((TM, TK), lambda i, j, k: (i, k)),
                pl.BlockSpec((TK, TN), lambda i, j, k: (k, j)),  # W resident over M
                pl.BlockSpec((TM, TN), lambda i, j, k: (i, j)),
            ],
            out_specs=pl.BlockSpec((TM, TN), lambda i, j, k: (i, j)),
            scratch_shapes=[pltpu.VMEM((TM, TN), jnp.float32)],
        ),
        compiler_params=pltpu.CompilerParams(
            dimension_semantics=("parallel", "parallel", "arbitrary")),
    )(s, w, r)


# ----------------------- params & forward -----------------------

def init_params(key, inplanes, planes):
    Cin_p = _rup(inplanes)
    Cmid_p = _rup(planes)
    Cout_p = _rup(planes * 4)
    ks = jax.random.split(key, 8)

    def bn_params(k, c, cp):
        k1, k2, k3, k4 = jax.random.split(k, 4)
        gamma = 1.0 + 0.1 * jax.random.normal(k1, (c,), jnp.float32)
        beta = 0.1 * jax.random.normal(k2, (c,), jnp.float32)
        mean = 0.1 * jax.random.normal(k3, (c,), jnp.float32)
        var = jnp.abs(1.0 + 0.1 * jax.random.normal(k4, (c,), jnp.float32))
        scale = gamma / jnp.sqrt(var + 1e-5)
        shift = beta - mean * scale
        return _pad_last(scale, cp), _pad_last(shift, cp)   # zero pad => padded lanes inert

    bn1_scale, bn1_shift = bn_params(ks[0], inplanes, Cin_p)
    bn2_scale, bn2_shift = bn_params(ks[1], planes, Cmid_p)
    bn3_scale, bn3_shift = bn_params(ks[2], planes, Cmid_p)

    # conv1: torch (planes, inplanes, 1, 1) -> (inplanes, planes), padded, bf16
    w1 = (jax.random.normal(ks[3], (inplanes, planes), jnp.float32)
          * (2.0 / inplanes) ** 0.5)
    w1 = jnp.zeros((Cin_p, Cmid_p), jnp.float32).at[:inplanes, :planes].set(w1)
    # conv2: torch (planes, planes, 3, 3) -> (3, 3, cin, cout), padded, bf16
    w2t = (jax.random.normal(ks[4], (planes, planes, 3, 3), jnp.float32)
           * (2.0 / (9 * planes)) ** 0.5)
    w2 = jnp.transpose(w2t, (2, 3, 1, 0))
    w2 = jnp.zeros((3, 3, Cmid_p, Cmid_p), jnp.float32).at[:, :, :planes, :planes].set(w2)
    # conv3: torch (planes*4, planes, 1, 1) -> (planes, planes*4), padded, bf16
    w3 = (jax.random.normal(ks[5], (planes, planes * 4), jnp.float32)
          * (2.0 / planes) ** 0.5)
    w3 = jnp.zeros((Cmid_p, Cout_p), jnp.float32).at[:planes, :planes * 4].set(w3)

    return dict(inplanes=inplanes, planes=planes,
                bn1_scale=bn1_scale, bn1_shift=bn1_shift,
                bn2_scale=bn2_scale, bn2_shift=bn2_shift,
                bn3_scale=bn3_scale, bn3_shift=bn3_shift,
                w1=w1.astype(jnp.bfloat16),
                w2=w2.astype(jnp.bfloat16),
                w3=w3.astype(jnp.bfloat16))


def pre_bottleneck_forward(x_nchw, params, timesteps, stride=1):
    """Forward pass of PreBottleneck (downsample=None path).

    x_nchw: (timesteps*batch, inplanes, H, W) f32, PyTorch NCHW convention.
    Returns (timesteps*batch, planes*4, Ho, Wo) NCHW f32.
    """
    TB, Cin, H, W = x_nchw.shape
    T = timesteps
    B = TB // T
    inplanes = params['inplanes']
    planes = params['planes']
    assert stride == 1 and inplanes == planes * 4, \
        "no-downsample PreBottleneck path requires stride == 1 and inplanes == planes*4"

    Cin_p = params['bn1_scale'].shape[0]
    Cmid_p = params['bn2_scale'].shape[0]
    M = B * H * W

    # NCHW -> channels-last (T, B*H*W, C), channel-padded to a lane multiple.
    x = jnp.transpose(x_nchw, (0, 2, 3, 1)).astype(jnp.float32)
    x = _pad_last(x.reshape(T, M, Cin), Cin_p)

    # s1 = IF1(BN1(x)) — also the residual (x is reassigned in the torch forward)
    s1 = bn_if(x, params['bn1_scale'], params['bn1_shift'])           # (T,M,Cin_p) bf16

    # s2 = IF2(BN2(conv1(s1))) — fused 1x1 matmul + BN + IF
    s2 = conv1x1_bn_if(s1, params['w1'],
                       params['bn2_scale'], params['bn2_shift'])       # (T,M,Cmid_p) bf16

    # conv2 (3x3, pad 1) as 9 shifted matmuls on a flattened padded layout,
    # fused with BN3 + IF3.  Pad spatial ((1,2),(1,1)) once; no 9x im2col.
    Wp = W + 2
    s2_sp = s2.reshape(T, B, H, W, Cmid_p)
    s2_pad = jnp.pad(s2_sp, ((0, 0), (0, 0), (1, 2), (1, 1), (0, 0)))
    s2_flat = s2_pad.reshape(T, B, (H + 3) * Wp, Cmid_p)
    s3_full = conv3x3_bn_if(s2_flat, params['w2'],
                            params['bn3_scale'], params['bn3_shift'], H, W)
    # drop the junk columns computed at width-pad positions
    s3 = s3_full.reshape(T, B, H, Wp, Cmid_p)[:, :, :, :W, :]
    s3 = s3.reshape(T * M, Cmid_p)

    # out = conv3(s3) + residual
    out = conv1x1_add(s3, params['w3'], s1.reshape(T * M, Cin_p))      # (T*M, Cout_p) f32
    out = out[:, :planes * 4]
    out = out.reshape(T * B, H, W, planes * 4)
    return jnp.transpose(out, (0, 3, 1, 2))                            # back to NCHW


if __name__ == "__main__":
    key = jax.random.PRNGKey(0)
    timesteps = 2
    batch = 2
    inplanes = 16          # must equal planes * expansion for the no-downsample path
    planes = 4
    H = W = 16

    params = init_params(key, inplanes, planes)
    x = jax.random.normal(jax.random.fold_in(key, 99),
                          (timesteps * batch, inplanes, H, W), jnp.float32)

    y = pre_bottleneck_forward(x, params, timesteps, stride=1)
    jax.block_until_ready(y)
    assert y.shape == (timesteps * batch, planes * 4, H, W), y.shape
    print("KERNEL_OK")
</pallas_src>

<mosaic_0001>
module attributes {stable_mosaic.version = 11 : i64} {
  func.func @_bn_if_kernel(%arg0: i32, %arg1: i32, %arg2: i32, %arg3: memref<1x128xf32, #tpu.memory_space<vmem>>, %arg4: memref<1x128xf32, #tpu.memory_space<vmem>>, %arg5: memref<1x512x128xf32, #tpu.memory_space<vmem>>, %arg6: memref<1x512x128xbf16, #tpu.memory_space<vmem>>, %arg7: memref<512x128xf32, #tpu.memory_space<vmem>>) attributes {dimension_semantics = [#tpu.dimension_semantics<parallel>, #tpu.dimension_semantics<parallel>, #tpu.dimension_semantics<arbitrary>], iteration_bounds = array<i64: 1, 1, 2>, scalar_prefetch = 0 : i64, scratch_operands = 1 : i64, tpu.core_type = #tpu.core_type<tc>, window_params = [{transform_indices = @transform_0, window_bounds = array<i64: 1, 128>}, {transform_indices = @transform_1, window_bounds = array<i64: 1, 128>}, {transform_indices = @transform_2, window_bounds = array<i64: 1, 512, 128>}, {transform_indices = @transform_3, window_bounds = array<i64: 1, 512, 128>}]} {
    %c0 = arith.constant 0 : index
    %c0_0 = arith.constant 0 : index
    %c0_1 = arith.constant 0 : index
    %0 = vector.load %arg5[%c0, %c0_0, %c0_1] : memref<1x512x128xf32, #tpu.memory_space<vmem>>, vector<1x512x128xf32>
    %1 = vector.shape_cast %0 : vector<1x512x128xf32> to vector<512x128xf32>
    %c0_2 = arith.constant 0 : index
    %c0_3 = arith.constant 0 : index
    %2 = vector.load %arg3[%c0_2, %c0_3] : memref<1x128xf32, #tpu.memory_space<vmem>>, vector<1x128xf32>
    %3 = vector.broadcast %2 : vector<1x128xf32> to vector<512x128xf32>
    %4 = arith.mulf %1, %3 : vector<512x128xf32>
    %c0_4 = arith.constant 0 : index
    %c0_5 = arith.constant 0 : index
    %5 = vector.load %arg4[%c0_4, %c0_5] : memref<1x128xf32, #tpu.memory_space<vmem>>, vector<1x128xf32>
    %6 = vector.broadcast %5 : vector<1x128xf32> to vector<512x128xf32>
    %7 = arith.addf %4, %6 : vector<512x128xf32>
    %c0_i32 = arith.constant 0 : i32
    %8 = arith.cmpi eq, %arg2, %c0_i32 : i32
    %c0_6 = arith.constant 0 : index
    %c0_7 = arith.constant 0 : index
    %9 = vector.load %arg7[%c0_6, %c0_7] : memref<512x128xf32, #tpu.memory_space<vmem>>, vector<512x128xf32>
    %cst = arith.constant 0.000000e+00 : f32
    %10 = vector.broadcast %cst : f32 to vector<512x128xf32>
    %11 = arith.select %8, %10, %9 : vector<512x128xf32>
    %12 = arith.addf %11, %7 : vector<512x128xf32>
    %cst_8 = arith.constant 1.000000e+00 : f32
    %13 = vector.broadcast %cst_8 : f32 to vector<512x128xf32>
    %14 = arith.cmpf oge, %12, %13 : vector<512x128xf32>
    %15 = arith.extui %14 : vector<512x128xi1> to vector<512x128xi32>
    %16 = arith.sitofp %15 : vector<512x128xi32> to vector<512x128xf32>
    %17 = arith.subf %12, %16 : vector<512x128xf32>
    %c0_9 = arith.constant 0 : index
    %c0_10 = arith.constant 0 : index
    %18 = vector.load %arg7[%c0_9, %c0_10] : memref<512x128xf32, #tpu.memory_space<vmem>>, vector<512x128xf32>
    tpu.vector_store %arg7[%c0_9, %c0_10], %17 {strides = array<i32>} : memref<512x128xf32, #tpu.memory_space<vmem>>, vector<512x128xf32>,
    %19 = arith.truncf %16 : vector<512x128xf32> to vector<512x128xbf16>
    %c0_11 = arith.constant 0 : index
    %c0_12 = arith.constant 0 : index
    %c0_13 = arith.constant 0 : index
    %20 = vector.load %arg6[%c0_11, %c0_12, %c0_13] : memref<1x512x128xbf16, #tpu.memory_space<vmem>>, vector<1x512x128xbf16>
    %21 = vector.shape_cast %20 : vector<1x512x128xbf16> to vector<512x128xbf16>
    %22 = vector.shape_cast %19 : vector<512x128xbf16> to vector<1x512x128xbf16>
    tpu.vector_store %arg6[%c0_11, %c0_12, %c0_13], %22 {strides = array<i32>} : memref<1x512x128xbf16, #tpu.memory_space<vmem>>, vector<1x512x128xbf16>,
    return
  }
  func.func @transform_0(%arg0: i32, %arg1: i32, %arg2: i32) -> (i32, i32) {
    %c0_i32 = arith.constant 0 : i32
    %c0_i32_0 = arith.constant 0 : i32
    return %c0_i32, %arg1 : i32, i32
  }
  func.func @transform_1(%arg0: i32, %arg1: i32, %arg2: i32) -> (i32, i32) {
    %c0_i32 = arith.constant 0 : i32
    %c0_i32_0 = arith.constant 0 : i32
    return %c0_i32, %arg1 : i32, i32
  }
  func.func @transform_2(%arg0: i32, %arg1: i32, %arg2: i32) -> (i32, i32, i32) {
    %c0_i32 = arith.constant 0 : i32
    return %arg2, %arg0, %arg1 : i32, i32, i32
  }
  func.func @transform_3(%arg0: i32, %arg1: i32, %arg2: i32) -> (i32, i32, i32) {
    %c0_i32 = arith.constant 0 : i32
    return %arg2, %arg0, %arg1 : i32, i32, i32
  }
}

</mosaic_0001>

<llo_original>
// kernel: tpu_custom_call.1
$region0: #{tpu_custom_call.1}
  #allocation0 [shape = 'u32[]', space=smem, size = 0x4, offset = 0x4, fixed_abs, tag = 'smem constant byte address 0x4 - core index']
  #allocation1 [shape = 'u32[144,128]{1,0:T(1,128)}', space=vmem, size = 0x12000, scoped, tag = 'internal scratch']
  #allocation2 [shape = 'f32[512,128]{1,0:T(8,128)}', space=vmem, size = 0x40000, scoped, tag = 'scratch operand']
  %s0 = inlined_call_operand.hbm [shape: f32[1,128], index: 0, kind: input, shape index: {}]
  %s1 = inlined_call_operand.vmem [shape: f32[1,128], index: 1, kind: input, shape index: {}]
  %s2 = inlined_call_operand.hbm [shape: f32[2,512,128], index: 2, kind: input, shape index: {}]
  %s3 = inlined_call_operand.hbm [shape: bf16[2,512,128], index: 3, kind: output, shape index: {}]
  %s4 = sld [smem:[#allocation0]]
  $region53: #{tpu_custom_call.1} parent=0
    _
  %s6 = ssub.s32 1, %s4
  %s7 = scalar_select 0, %s6, %s4
  $region1: #{tpu_custom_call.1} parent=0
    #allocation3 [shape = 'u8[512]{0}', space=vmem, size = 0x400, scoped, tag = 'input window, operand 0, single buffered']
    #allocation4 [shape = 's32[2]{0}', space=sflag, size = 0x8, scoped, tag = 'scoped memory for tpu_custom_call.1']
    #allocation5 [shape = 's32[2]{0}', space=sflag, size = 0x8, scoped, tag = 'scoped memory for tpu_custom_call.1']
    #allocation6 [shape = 'u8[524288]{0}', space=vmem, size = 0x80000, scoped, tag = 'input window, operand 2']
    #allocation7 [shape = 's32[2]{0}', space=sflag, size = 0x8, scoped, tag = 'scoped memory for tpu_custom_call.1']
    #allocation8 [shape = 'u8[262144]{0}', space=vmem, size = 0x40000, scoped, tag = 'output window, operand 0']
    %8 = vsyncpa [#allocation4], 0
    %9 = vsyncpa [#allocation7], 0
    %s10 = scalar_lea.sflag [#allocation7], 1
    %11 = vsyncpa %s10, 0
    %12 = vsyncpa [#allocation5], 0
    %s13 = scalar_lea.sflag [#allocation5], 1
    %14 = vsyncpa %s13, 0
    loop: start=0, step=1, limit=4
    $region2: #{tpu_custom_call.1} parent=1 // loop_pre_header
      _
    $region3: #{tpu_custom_call.1} parent=1 // loop_header
      %s16 = sphi 0, %s20
      %p17 = scmp.ge.s32.totalorder %s16, 4
      %s23 = sphi 0, %s42
      %s24 = sphi 0, %s38
      %s25 = sphi 0, %s34
      %s26 = sphi 0, %s23
      %s27 = sphi 0, %s24
      %s28 = sphi 0, %s25
      %s29 = sphi 0, %s26
      %s30 = sphi 0, %s27
      %s31 = sphi 0, %s28
      %s45 = sphi 0, %s47
      %s48 = sphi 0, %s45
      %s49 = sphi 0, %s48
      %s65 = sphi 0, %s49
      %s71 = sphi 0, %s73
      %s74 = sphi 0, %s71
      %s75 = sphi 0, %s74
      %s91 = sphi 0, %s75
      %s101 = sphi 0, %s103
      %s104 = sphi 0, %s101
      %s105 = sphi 0, %s104
      %s121 = sphi 0, %s105
      %s131 = sphi 0, %s133
      %s134 = sphi 0, %s131
      %s135 = sphi 0, %s134
      %s151 = sphi 0, %s135
    $region4: #{tpu_custom_call.1} parent=1 // loop_header_branch
      %19 = sbr.rel (%p17) target = $region8
    $region5: #{tpu_custom_call.1} parent=1 // loop_body
      %s21 = ssub.s32 %s16, 1
      %s22 = ssub.s32 %s16, 2
      %s32 = sadd.s32 1, %s25
      %p33 = scmp.ge.s32.totalorder %s32, 2
      %s34 = scalar_select %p33, 0, %s32
      %s35 = sadd.s32 1, %s24
      %s36 = scalar_select %p33, %s35, %s24
      %p37 = scmp.ge.s32.totalorder %s36, 1
      %s38 = scalar_select %p37, 0, %s36
      %s39 = sadd.s32 1, %s23
      %s40 = scalar_select %p37, %s39, %s23
      %p41 = scmp.ge.s32.totalorder %s40, 1
      %s42 = scalar_select %p41, 0, %s40
      %s43 = ssub.s32 %s24, %s38
      %p44 = scmp.eq.s32.totalorder %s43, 0
      %s46 = sadd.s32 %s45, 1
      %s47 = scalar_select %p44, %s45, %s46
      %p50 = pneg %p44
      %p51 = scmp.eq.s32.totalorder %s16, 1
      %p52 = por %p50, %p51
      %p53 = scmp.ne.s32.totalorder %s45, %s48
      %p54 = scmp.eq.s32.totalorder %s16, 0
      %p55 = por %p53, %p54
      %p56 = scmp.ne.s32.totalorder %s45, %s48
      %p57 = scmp.eq.s32.totalorder %s21, 1
      %p58 = por %p56, %p57
      %p59 = scmp.ne.s32.totalorder %s48, %s49
      %p60 = scmp.eq.s32.totalorder %s21, 0
      %p61 = por %p59, %p60
      %p62 = scmp.ne.s32.totalorder %s48, %s49
      %p63 = scmp.eq.s32.totalorder %s22, 1
      %p64 = por %p62, %p63
      %p66 = scmp.ne.s32.totalorder %s49, %s65
      %p67 = scmp.eq.s32.totalorder %s22, 0
      %p68 = por %p66, %p67
      %s69 = ssub.s32 %s24, %s38
      %p70 = scmp.eq.s32.totalorder %s69, 0
      %s72 = sadd.s32 %s71, 1
      %s73 = scalar_select %p70, %s71, %s72
      %p76 = pneg %p70
      %p77 = scmp.eq.s32.totalorder %s16, 1
      %p78 = por %p76, %p77
      %p79 = scmp.ne.s32.totalorder %s71, %s74
      %p80 = scmp.eq.s32.totalorder %s16, 0
      %p81 = por %p79, %p80
      %p82 = scmp.ne.s32.totalorder %s71, %s74
      %p83 = scmp.eq.s32.totalorder %s21, 1
      %p84 = por %p82, %p83
      %p85 = scmp.ne.s32.totalorder %s74, %s75
      %p86 = scmp.eq.s32.totalorder %s21, 0
      %p87 = por %p85, %p86
      %p88 = scmp.ne.s32.totalorder %s74, %s75
      %p89 = scmp.eq.s32.totalorder %s22, 1
      %p90 = por %p88, %p89
      %p92 = scmp.ne.s32.totalorder %s75, %s91
      %p93 = scmp.eq.s32.totalorder %s22, 0
      %p94 = por %p92, %p93
      %s95 = ssub.s32 %s25, %s34
      %s96 = ssub.s32 %s23, %s42
      %s97 = sor.u32 %s95, %s96
      %s98 = ssub.s32 %s24, %s38
      %s99 = sor.u32 %s97, %s98
      %p100 = scmp.eq.s32.totalorder %s99, 0
      %s102 = sadd.s32 %s101, 1
      %s103 = scalar_select %p100, %s101, %s102
      %p106 = pneg %p100
      %p107 = scmp.eq.s32.totalorder %s16, 1
      %p108 = por %p106, %p107
      %p109 = scmp.ne.s32.totalorder %s101, %s104
      %p110 = scmp.eq.s32.totalorder %s16, 0
      %p111 = por %p109, %p110
      %p112 = scmp.ne.s32.totalorder %s101, %s104
      %p113 = scmp.eq.s32.totalorder %s21, 1
      %p114 = por %p112, %p113
      %p115 = scmp.ne.s32.totalorder %s104, %s105
      %p116 = scmp.eq.s32.totalorder %s21, 0
      %p117 = por %p115, %p116
      %p118 = scmp.ne.s32.totalorder %s104, %s105
      %p119 = scmp.eq.s32.totalorder %s22, 1
      %p120 = por %p118, %p119
      %p122 = scmp.ne.s32.totalorder %s105, %s121
      %p123 = scmp.eq.s32.totalorder %s22, 0
      %p124 = por %p122, %p123
      %s125 = ssub.s32 %s25, %s34
      %s126 = ssub.s32 %s23, %s42
      %s127 = sor.u32 %s125, %s126
      %s128 = ssub.s32 %s24, %s38
      %s129 = sor.u32 %s127, %s128
      %p130 = scmp.eq.s32.totalorder %s129, 0
      %s132 = sadd.s32 %s131, 1
      %s133 = scalar_select %p130, %s131, %s132
      %p136 = pneg %p130
      %p137 = scmp.eq.s32.totalorder %s16, 1
      %p138 = por %p136, %p137
      %p139 = scmp.ne.s32.totalorder %s131, %s134
      %p140 = scmp.eq.s32.totalorder %s16, 0
      %p141 = por %p139, %p140
      %p142 = scmp.ne.s32.totalorder %s131, %s134
      %p143 = scmp.eq.s32.totalorder %s21, 1
      %p144 = por %p142, %p143
      %p145 = scmp.ne.s32.totalorder %s134, %s135
      %p146 = scmp.eq.s32.totalorder %s21, 0
      %p147 = por %p145, %p146
      %p148 = scmp.ne.s32.totalorder %s134, %s135
      %p149 = scmp.eq.s32.totalorder %s22, 1
      %p150 = por %p148, %p149
      %p152 = scmp.ne.s32.totalorder %s135, %s151
      %p153 = scmp.eq.s32.totalorder %s22, 0
      %p154 = por %p152, %p153
      %p155 = scmp.le.s32.totalorder 1, %s16
      %p156 = scmp.lt.s32.totalorder %s16, 3
      %p157 = pnand %p155, %p156
      %p158 = pneg %p157
      // Predicated region
      $region9: #{tpu_custom_call.1} parent=5 // pred_check
        _
      $region10: #{tpu_custom_call.1} parent=5 // pred_check_branch
        %160 = sbr.rel (%p157) target = $region12
      $region11: #{tpu_custom_call.1} parent=5 // pred_region
        %s161 = ssub.s32 %s16, 1
        // Predicated region
        $region13: #{tpu_custom_call.1} parent=11 // pred_check
          %p162 = pneg %p61
        $region14: #{tpu_custom_call.1} parent=11 // pred_check_branch
          %164 = sbr.rel (%p162) target = $region16
        $region15: #{tpu_custom_call.1} parent=11 // pred_region
          %s166 = ssub.s32 16, 16
          %167 = vsyncadd [#allocation4], %s166
          %s168 = smul.addr %s27, 16
          %s169 = scalar_lea.hbm %s0, %s168
          %s171 = sshll.u32 [#allocation3], 4
          %s172 = int_to_ptr.vmem [resolvable:$true] %s171
          %174 = dma.hbm_to_vmem [thread:$0]  %s169, 16, %s172, [#allocation4]
        $region16: #{tpu_custom_call.1} parent=11 // pred_fallthru
          _
        // Predicated region
        $region17: #{tpu_custom_call.1} parent=11 // pred_check
          %p175 = pneg %p87
        $region18: #{tpu_custom_call.1} parent=11 // pred_check_branch
          %177 = sbr.rel (%p175) target = $region20
        $region19: #{tpu_custom_call.1} parent=11 // pred_region
          %p178 = scmp.lt.s32.totalorder %s27, 0
          %s179 = scalar_select %p178, %s27, 0
          %s180 = scalar_lea.vmem %s1, %s179
        $region20: #{tpu_custom_call.1} parent=11 // pred_fallthru
          _
      $region12: #{tpu_custom_call.1} parent=5 // pred_fallthru
        _
      %p181 = scmp.lt.s32.totalorder %s16, 2
      // Predicated region
      $region21: #{tpu_custom_call.1} parent=5 // pred_check
        %p182 = pneg %p181
      $region22: #{tpu_custom_call.1} parent=5 // pred_check_branch
        %184 = sbr.rel (%p182) target = $region24
      $region23: #{tpu_custom_call.1} parent=5 // pred_region
        // Predicated region
        $region25: #{tpu_custom_call.1} parent=23 // pred_check
          %p185 = pneg %p111
        $region26: #{tpu_custom_call.1} parent=23 // pred_check_branch
          %187 = sbr.rel (%p185) target = $region28
        $region27: #{tpu_custom_call.1} parent=23 // pred_region
          %s188 = sand.u32 %s101, 1
          %s189 = scalar_lea.sflag [#allocation7], %s188
          %s190 = sand.u32 %s101, 1
          %s191 = smul.addr %s190, 512
          %s192 = scalar_lea.vmem [#allocation6], %s191
          %s193 = smul.u32 64, %s23
          %s195 = ssub.s32 8192, 8192
          %196 = vsyncadd %s189, %s195
          %s197 = sadd.s32 %s24, %s193
          %s198 = smul.addr %s25, 64
          %s199 = sadd.s32 %s197, %s198
          %s200 = smul.addr %s199, 128
          %s201 = scalar_lea.hbm %s2, %s200
          %s202 = sshll.u32 %s192, 4
          %s203 = int_to_ptr.vmem [resolvable:$true] %s202
          %208 = dma.hbm_to_vmem [thread:$0]  %s201, 8192, %s203, %s189, 128, 128, 8
        $region28: #{tpu_custom_call.1} parent=23 // pred_fallthru
          _
      $region24: #{tpu_custom_call.1} parent=5 // pred_fallthru
        _
      %p209 = scmp.le.s32.totalorder 1, %s16
      %p210 = scmp.lt.s32.totalorder %s16, 3
      %p211 = pnand %p209, %p210
      %p212 = pneg %p211
      // Predicated region
      $region29: #{tpu_custom_call.1} parent=5 // pred_check
        _
      $region30: #{tpu_custom_call.1} parent=5 // pred_check_branch
        %214 = sbr.rel (%p211) target = $region32
      $region31: #{tpu_custom_call.1} parent=5 // pred_region
        %s215 = ssub.s32 %s16, 1
        // Predicated region
        $region33: #{tpu_custom_call.1} parent=31 // pred_check
          %p216 = pneg %p61
        $region34: #{tpu_custom_call.1} parent=31 // pred_check_branch
          %218 = sbr.rel (%p216) target = $region36
        $region35: #{tpu_custom_call.1} parent=31 // pred_region
          %219 = dma.done [#allocation4], 16
        $region36: #{tpu_custom_call.1} parent=31 // pred_fallthru
          _
        %s220 = sand.u32 %s104, 1
        %s221 = scalar_lea.sflag [#allocation7], %s220
        %s222 = sand.u32 %s104, 1
        %s223 = smul.addr %s222, 512
        %s224 = scalar_lea.vmem [#allocation6], %s223
        // Predicated region
        $region37: #{tpu_custom_call.1} parent=31 // pred_check
          %p225 = pneg %p117
        $region38: #{tpu_custom_call.1} parent=31 // pred_check_branch
          %227 = sbr.rel (%p225) target = $region40
        $region39: #{tpu_custom_call.1} parent=31 // pred_region
          %228 = dma.done %s221, 8192
        $region40: #{tpu_custom_call.1} parent=31 // pred_fallthru
          _
        %p229 = pneg %p61
        %p230 = pneg %p58
        %p231 = scmp.lt.s32.totalorder %s27, 0
        %s232 = scalar_select %p231, %s27, 0
        %s233 = scalar_lea.vmem %s1, %s232
        %p234 = pneg %p87
        %p235 = pneg %p84
        %s236 = sand.u32 %s104, 1
        %s237 = scalar_lea.sflag [#allocation7], %s236
        %s238 = sand.u32 %s104, 1
        %s239 = smul.addr %s238, 512
        %s240 = scalar_lea.vmem [#allocation6], %s239
        %p241 = pneg %p117
        %p242 = pneg %p114
        %p243 = pneg %p147
        %p244 = pneg %p144
        %s245 = sand.u32 %s134, 1
        %s246 = scalar_lea.sflag [#allocation5], %s245
        %s247 = sand.u32 %s134, 1
        %s248 = smul.addr %s247, 256
        %s249 = scalar_lea.vmem [#allocation8], %s248
        %p250 = scmp.lt.s32.totalorder %s27, 0
        %s251 = scalar_select %p250, %s27, 0
        %s252 = scalar_lea.vmem %s1, %s251
        %s253 = smul.u32 64, %s26
        %s254 = smul.u32 64, %s26
        %v255 = vld [vmem:[%s224] sm:$0xff]
        %v256 = vld [vmem:[%s224 + $0x8] sm:$0xff]
        %v257 = vld [vmem:[%s224 + $0x10] sm:$0xff]
        %v258 = vld [vmem:[%s224 + $0x18] sm:$0xff]
        %v259 = vld [vmem:[%s224 + $0x20] sm:$0xff]
        %v260 = vld [vmem:[%s224 + $0x28] sm:$0xff]
        %v261 = vld [vmem:[%s224 + $0x30] sm:$0xff]
        %v262 = vld [vmem:[%s224 + $0x38] sm:$0xff]
        %v263 = vld [vmem:[%s224 + $0x40] sm:$0xff]
        %v264 = vld [vmem:[%s224 + $0x48] sm:$0xff]
        %v265 = vld [vmem:[%s224 + $0x50] sm:$0xff]
        %v266 = vld [vmem:[%s224 + $0x58] sm:$0xff]
        %v267 = vld [vmem:[%s224 + $0x60] sm:$0xff]
        %v268 = vld [vmem:[%s224 + $0x68] sm:$0xff]
        %v269 = vld [vmem:[%s224 + $0x70] sm:$0xff]
        %v270 = vld [vmem:[%s224 + $0x78] sm:$0xff]
        %v271 = vld [vmem:[%s224 + $0x80] sm:$0xff]
        %v272 = vld [vmem:[%s224 + $0x88] sm:$0xff]
        %v273 = vld [vmem:[%s224 + $0x90] sm:$0xff]
        %v274 = vld [vmem:[%s224 + $0x98] sm:$0xff]
        %v275 = vld [vmem:[%s224 + $0xa0] sm:$0xff]
        %v276 = vld [vmem:[%s224 + $0xa8] sm:$0xff]
        %v277 = vld [vmem:[%s224 + $0xb0] sm:$0xff]
        %v278 = vld [vmem:[%s224 + $0xb8] sm:$0xff]
        %v279 = vld [vmem:[%s224 + $0xc0] sm:$0xff]
        %v280 = vld [vmem:[%s224 + $0xc8] sm:$0xff]
        %v281 = vld [vmem:[%s224 + $0xd0] sm:$0xff]
        %v282 = vld [vmem:[%s224 + $0xd8] sm:$0xff]
        %v283 = vld [vmem:[%s224 + $0xe0] sm:$0xff]
        %v284 = vld [vmem:[%s224 + $0xe8] sm:$0xff]
        %v285 = vld [vmem:[%s224 + $0xf0] sm:$0xff]
        %v286 = vld [vmem:[%s224 + $0xf8] sm:$0xff]
        %v287 = vld [vmem:[%s224 + $0x100] sm:$0xff]
        %v288 = vld [vmem:[%s224 + $0x108] sm:$0xff]
        %v289 = vld [vmem:[%s224 + $0x110] sm:$0xff]
        %v290 = vld [vmem:[%s224 + $0x118] sm:$0xff]
        %v291 = vld [vmem:[%s224 + $0x120] sm:$0xff]
        %v292 = vld [vmem:[%s224 + $0x128] sm:$0xff]
        %v293 = vld [vmem:[%s224 + $0x130] sm:$0xff]
        %v294 = vld [vmem:[%s224 + $0x138] sm:$0xff]
        %v295 = vld [vmem:[%s224 + $0x140] sm:$0xff]
        %v296 = vld [vmem:[%s224 + $0x148] sm:$0xff]
        %v297 = vld [vmem:[%s224 + $0x150] sm:$0xff]
        %v298 = vld [vmem:[%s224 + $0x158] sm:$0xff]
        %v299 = vld [vmem:[%s224 + $0x160] sm:$0xff]
        %v300 = vld [vmem:[%s224 + $0x168] sm:$0xff]
        %v301 = vld [vmem:[%s224 + $0x170] sm:$0xff]
        %v302 = vld [vmem:[%s224 + $0x178] sm:$0xff]
        %v303 = vld [vmem:[%s224 + $0x180] sm:$0xff]
        %v304 = vld [vmem:[%s224 + $0x188] sm:$0xff]
        %v305 = vld [vmem:[%s224 + $0x190] sm:$0xff]
        %v306 = vld [vmem:[%s224 + $0x198] sm:$0xff]
        %v307 = vld [vmem:[%s224 + $0x1a0] sm:$0xff]
        %v308 = vld [vmem:[%s224 + $0x1a8] sm:$0xff]
        %v309 = vld [vmem:[%s224 + $0x1b0] sm:$0xff]
        %v310 = vld [vmem:[%s224 + $0x1b8] sm:$0xff]
        %v311 = vld [vmem:[%s224 + $0x1c0] sm:$0xff]
        %v312 = vld [vmem:[%s224 + $0x1c8] sm:$0xff]
        %v313 = vld [vmem:[%s224 + $0x1d0] sm:$0xff]
        %v314 = vld [vmem:[%s224 + $0x1d8] sm:$0xff]
        %v315 = vld [vmem:[%s224 + $0x1e0] sm:$0xff]
        %v316 = vld [vmem:[%s224 + $0x1e8] sm:$0xff]
        %v317 = vld [vmem:[%s224 + $0x1f0] sm:$0xff]
        %v318 = vld [vmem:[%s224 + $0x1f8] sm:$0xff]
        %v319 = vld [vmem:[#allocation3] sm:$0x1]
        %v321 = vlaneseq
        %v322 = vshrl.u32 %v321, 7
        %v323 = vsub.s32 0, %v322
        %v324 = vrot.slane %v319, %v323
        %v326 = vmul.f32 %v255, %v324
        %v327 = vmul.f32 %v256, %v324
        %v328 = vmul.f32 %v257, %v324
        %v329 = vmul.f32 %v258, %v324
        %v330 = vmul.f32 %v259, %v324
        %v331 = vmul.f32 %v260, %v324
        %v332 = vmul.f32 %v261, %v324
        %v333 = vmul.f32 %v262, %v324
        %v334 = vmul.f32 %v263, %v324
        %v335 = vmul.f32 %v264, %v324
        %v336 = vmul.f32 %v265, %v324
        %v337 = vmul.f32 %v266, %v324
        %v338 = vmul.f32 %v267, %v324
        %v339 = vmul.f32 %v268, %v324
        %v340 = vmul.f32 %v269, %v324
        %v341 = vmul.f32 %v270, %v324
        %v342 = vmul.f32 %v271, %v324
        %v343 = vmul.f32 %v272, %v324
        %v344 = vmul.f32 %v273, %v324
        %v345 = vmul.f32 %v274, %v324
        %v346 = vmul.f32 %v275, %v324
        %v347 = vmul.f32 %v276, %v324
        %v348 = vmul.f32 %v277, %v324
        %v349 = vmul.f32 %v278, %v324
        %v350 = vmul.f32 %v279, %v324
        %v351 = vmul.f32 %v280, %v324
        %v352 = vmul.f32 %v281, %v324
        %v353 = vmul.f32 %v282, %v324
        %v354 = vmul.f32 %v283, %v324
        %v355 = vmul.f32 %v284, %v324
        %v356 = vmul.f32 %v285, %v324
        %v357 = vmul.f32 %v286, %v324
        %v358 = vmul.f32 %v287, %v324
        %v359 = vmul.f32 %v288, %v324
        %v360 = vmul.f32 %v289, %v324
        %v361 = vmul.f32 %v290, %v324
        %v362 = vmul.f32 %v291, %v324
        %v363 = vmul.f32 %v292, %v324
        %v364 = vmul.f32 %v293, %v324
        %v365 = vmul.f32 %v294, %v324
        %v366 = vmul.f32 %v295, %v324
        %v367 = vmul.f32 %v296, %v324
        %v368 = vmul.f32 %v297, %v324
        %v369 = vmul.f32 %v298, %v324
        %v370 = vmul.f32 %v299, %v324
        %v371 = vmul.f32 %v300, %v324
        %v372 = vmul.f32 %v301, %v324
        %v373 = vmul.f32 %v302, %v324
        %v374 = vmul.f32 %v303, %v324
        %v375 = vmul.f32 %v304, %v324
        %v376 = vmul.f32 %v305, %v324
        %v377 = vmul.f32 %v306, %v324
        %v378 = vmul.f32 %v307, %v324
        %v379 = vmul.f32 %v308, %v324
        %v380 = vmul.f32 %v309, %v324
        %v381 = vmul.f32 %v310, %v324
        %v382 = vmul.f32 %v311, %v324
        %v383 = vmul.f32 %v312, %v324
        %v384 = vmul.f32 %v313, %v324
        %v385 = vmul.f32 %v314, %v324
        %v386 = vmul.f32 %v315, %v324
        %v387 = vmul.f32 %v316, %v324
        %v388 = vmul.f32 %v317, %v324
        %v389 = vmul.f32 %v318, %v324
        %v390 = vld [vmem:[%s252] sm:$0x1]
        %v392 = vlaneseq
        %v393 = vshrl.u32 %v392, 7
        %v394 = vsub.s32 0, %v393
        %v395 = vrot.slane %v390, %v394
        %v397 = vadd.f32 %v326, %v395
        %v398 = vadd.f32 %v327, %v395
        %v399 = vadd.f32 %v328, %v395
        %v400 = vadd.f32 %v329, %v395
        %v401 = vadd.f32 %v330, %v395
        %v402 = vadd.f32 %v331, %v395
        %v403 = vadd.f32 %v332, %v395
        %v404 = vadd.f32 %v333, %v395
        %v405 = vadd.f32 %v334, %v395
        %v406 = vadd.f32 %v335, %v395
        %v407 = vadd.f32 %v336, %v395
        %v408 = vadd.f32 %v337, %v395
        %v409 = vadd.f32 %v338, %v395
        %v410 = vadd.f32 %v339, %v395
        %v411 = vadd.f32 %v340, %v395
        %v412 = vadd.f32 %v341, %v395
        %v413 = vadd.f32 %v342, %v395
        %v414 = vadd.f32 %v343, %v395
        %v415 = vadd.f32 %v344, %v395
        %v416 = vadd.f32 %v345, %v395
        %v417 = vadd.f32 %v346, %v395
        %v418 = vadd.f32 %v347, %v395
        %v419 = vadd.f32 %v348, %v395
        %v420 = vadd.f32 %v349, %v395
        %v421 = vadd.f32 %v350, %v395
        %v422 = vadd.f32 %v351, %v395
        %v423 = vadd.f32 %v352, %v395
        %v424 = vadd.f32 %v353, %v395
        %v425 = vadd.f32 %v354, %v395
        %v426 = vadd.f32 %v355, %v395
        %v427 = vadd.f32 %v356, %v395
        %v428 = vadd.f32 %v357, %v395
        %v429 = vadd.f32 %v358, %v395
        %v430 = vadd.f32 %v359, %v395
        %v431 = vadd.f32 %v360, %v395
        %v432 = vadd.f32 %v361, %v395
        %v433 = vadd.f32 %v362, %v395
        %v434 = vadd.f32 %v363, %v395
        %v435 = vadd.f32 %v364, %v395
        %v436 = vadd.f32 %v365, %v395
        %v437 = vadd.f32 %v366, %v395
        %v438 = vadd.f32 %v367, %v395
        %v439 = vadd.f32 %v368, %v395
        %v440 = vadd.f32 %v369, %v395
        %v441 = vadd.f32 %v370, %v395
        %v442 = vadd.f32 %v371, %v395
        %v443 = vadd.f32 %v372, %v395
        %v444 = vadd.f32 %v373, %v395
        %v445 = vadd.f32 %v374, %v395
        %v446 = vadd.f32 %v375, %v395
        %v447 = vadd.f32 %v376, %v395
        %v448 = vadd.f32 %v377, %v395
        %v449 = vadd.f32 %v378, %v395
        %v450 = vadd.f32 %v379, %v395
        %v451 = vadd.f32 %v380, %v395
        %v452 = vadd.f32 %v381, %v395
        %v453 = vadd.f32 %v382, %v395
        %v454 = vadd.f32 %v383, %v395
        %v455 = vadd.f32 %v384, %v395
        %v456 = vadd.f32 %v385, %v395
        %v457 = vadd.f32 %v386, %v395
        %v458 = vadd.f32 %v387, %v395
        %v459 = vadd.f32 %v388, %v395
        %v460 = vadd.f32 %v389, %v395
        %p461 = scmp.eq.s32.totalorder %s28, 0
        %v462 = vld [vmem:[#allocation2] sm:$0xff]
        %v463 = vld [vmem:[#allocation2 + $0x8] sm:$0xff]
        %v464 = vld [vmem:[#allocation2 + $0x10] sm:$0xff]
        %v465 = vld [vmem:[#allocation2 + $0x18] sm:$0xff]
        %v466 = vld [vmem:[#allocation2 + $0x20] sm:$0xff]
        %v467 = vld [vmem:[#allocation2 + $0x28] sm:$0xff]
        %v468 = vld [vmem:[#allocation2 + $0x30] sm:$0xff]
        %v469 = vld [vmem:[#allocation2 + $0x38] sm:$0xff]
        %v470 = vld [vmem:[#allocation2 + $0x40] sm:$0xff]
        %v471 = vld [vmem:[#allocation2 + $0x48] sm:$0xff]
        %v472 = vld [vmem:[#allocation2 + $0x50] sm:$0xff]
        %v473 = vld [vmem:[#allocation2 + $0x58] sm:$0xff]
        %v474 = vld [vmem:[#allocation2 + $0x60] sm:$0xff]
        %v475 = vld [vmem:[#allocation2 + $0x68] sm:$0xff]
        %v476 = vld [vmem:[#allocation2 + $0x70] sm:$0xff]
        %v477 = vld [vmem:[#allocation2 + $0x78] sm:$0xff]
        %v478 = vld [vmem:[#allocation2 + $0x80] sm:$0xff]
        %v479 = vld [vmem:[#allocation2 + $0x88] sm:$0xff]
        %v480 = vld [vmem:[#allocation2 + $0x90] sm:$0xff]
        %v481 = vld [vmem:[#allocation2 + $0x98] sm:$0xff]
        %v482 = vld [vmem:[#allocation2 + $0xa0] sm:$0xff]
        %v483 = vld [vmem:[#allocation2 + $0xa8] sm:$0xff]
        %v484 = vld [vmem:[#allocation2 + $0xb0] sm:$0xff]
        %v485 = vld [vmem:[#allocation2 + $0xb8] sm:$0xff]
        %v486 = vld [vmem:[#allocation2 + $0xc0] sm:$0xff]
        %v487 = vld [vmem:[#allocation2 + $0xc8] sm:$0xff]
        %v488 = vld [vmem:[#allocation2 + $0xd0] sm:$0xff]
        %v489 = vld [vmem:[#allocation2 + $0xd8] sm:$0xff]
        %v490 = vld [vmem:[#allocation2 + $0xe0] sm:$0xff]
        %v491 = vld [vmem:[#allocation2 + $0xe8] sm:$0xff]
        %v492 = vld [vmem:[#allocation2 + $0xf0] sm:$0xff]
        %v493 = vld [vmem:[#allocation2 + $0xf8] sm:$0xff]
        %v494 = vld [vmem:[#allocation2 + $0x100] sm:$0xff]
        %v495 = vld [vmem:[#allocation2 + $0x108] sm:$0xff]
        %v496 = vld [vmem:[#allocation2 + $0x110] sm:$0xff]
        %v497 = vld [vmem:[#allocation2 + $0x118] sm:$0xff]
        %v498 = vld [vmem:[#allocation2 + $0x120] sm:$0xff]
        %v499 = vld [vmem:[#allocation2 + $0x128] sm:$0xff]
        %v500 = vld [vmem:[#allocation2 + $0x130] sm:$0xff]
        %v501 = vld [vmem:[#allocation2 + $0x138] sm:$0xff]
        %v502 = vld [vmem:[#allocation2 + $0x140] sm:$0xff]
        %v503 = vld [vmem:[#allocation2 + $0x148] sm:$0xff]
        %v504 = vld [vmem:[#allocation2 + $0x150] sm:$0xff]
        %v505 = vld [vmem:[#allocation2 + $0x158] sm:$0xff]
        %v506 = vld [vmem:[#allocation2 + $0x160] sm:$0xff]
        %v507 = vld [vmem:[#allocation2 + $0x168] sm:$0xff]
        %v508 = vld [vmem:[#allocation2 + $0x170] sm:$0xff]
        %v509 = vld [vmem:[#allocation2 + $0x178] sm:$0xff]
        %v510 = vld [vmem:[#allocation2 + $0x180] sm:$0xff]
        %v511 = vld [vmem:[#allocation2 + $0x188] sm:$0xff]
        %v512 = vld [vmem:[#allocation2 + $0x190] sm:$0xff]
        %v513 = vld [vmem:[#allocation2 + $0x198] sm:$0xff]
        %v514 = vld [vmem:[#allocation2 + $0x1a0] sm:$0xff]
        %v515 = vld [vmem:[#allocation2 + $0x1a8] sm:$0xff]
        %v516 = vld [vmem:[#allocation2 + $0x1b0] sm:$0xff]
        %v517 = vld [vmem:[#allocation2 + $0x1b8] sm:$0xff]
        %v518 = vld [vmem:[#allocation2 + $0x1c0] sm:$0xff]
        %v519 = vld [vmem:[#allocation2 + $0x1c8] sm:$0xff]
        %v520 = vld [vmem:[#allocation2 + $0x1d0] sm:$0xff]
        %v521 = vld [vmem:[#allocation2 + $0x1d8] sm:$0xff]
        %v522 = vld [vmem:[#allocation2 + $0x1e0] sm:$0xff]
        %v523 = vld [vmem:[#allocation2 + $0x1e8] sm:$0xff]
        %v524 = vld [vmem:[#allocation2 + $0x1f0] sm:$0xff]
        %v525 = vld [vmem:[#allocation2 + $0x1f8] sm:$0xff]
        %s526 = scalar_select %p461, 1, 0
        %v527 = vstv %s526
        %vm528 = vcmp.eq.s32.totalorder %v527, 1
        %v529 = vsel %vm528, 0.0, %v462
        %v530 = vsel %vm528, 0.0, %v463
        %v531 = vsel %vm528, 0.0, %v464
        %v532 = vsel %vm528, 0.0, %v465
        %v533 = vsel %vm528, 0.0, %v466
        %v534 = vsel %vm528, 0.0, %v467
        %v535 = vsel %vm528, 0.0, %v468
        %v536 = vsel %vm528, 0.0, %v469
        %v537 = vsel %vm528, 0.0, %v470
        %v538 = vsel %vm528, 0.0, %v471
        %v539 = vsel %vm528, 0.0, %v472
        %v540 = vsel %vm528, 0.0, %v473
        %v541 = vsel %vm528, 0.0, %v474
        %v542 = vsel %vm528, 0.0, %v475
        %v543 = vsel %vm528, 0.0, %v476
        %v544 = vsel %vm528, 0.0, %v477
        %v545 = vsel %vm528, 0.0, %v478
        %v546 = vsel %vm528, 0.0, %v479
        %v547 = vsel %vm528, 0.0, %v480
        %v548 = vsel %vm528, 0.0, %v481
        %v549 = vsel %vm528, 0.0, %v482
        %v550 = vsel %vm528, 0.0, %v483
        %v551 = vsel %vm528, 0.0, %v484
        %v552 = vsel %vm528, 0.0, %v485
        %v553 = vsel %vm528, 0.0, %v486
        %v554 = vsel %vm528, 0.0, %v487
        %v555 = vsel %vm528, 0.0, %v488
        %v556 = vsel %vm528, 0.0, %v489
        %v557 = vsel %vm528, 0.0, %v490
        %v558 = vsel %vm528, 0.0, %v491
        %v559 = vsel %vm528, 0.0, %v492
        %v560 = vsel %vm528, 0.0, %v493
        %v561 = vsel %vm528, 0.0, %v494
        %v562 = vsel %vm528, 0.0, %v495
        %v563 = vsel %vm528, 0.0, %v496
        %v564 = vsel %vm528, 0.0, %v497
        %v565 = vsel %vm528, 0.0, %v498
        %v566 = vsel %vm528, 0.0, %v499
        %v567 = vsel %vm528, 0.0, %v500
        %v568 = vsel %vm528, 0.0, %v501
        %v569 = vsel %vm528, 0.0, %v502
        %v570 = vsel %vm528, 0.0, %v503
        %v571 = vsel %vm528, 0.0, %v504
        %v572 = vsel %vm528, 0.0, %v505
        %v573 = vsel %vm528, 0.0, %v506
        %v574 = vsel %vm528, 0.0, %v507
        %v575 = vsel %vm528, 0.0, %v508
        %v576 = vsel %vm528, 0.0, %v509
        %v577 = vsel %vm528, 0.0, %v510
        %v578 = vsel %vm528, 0.0, %v511
        %v579 = vsel %vm528, 0.0, %v512
        %v580 = vsel %vm528, 0.0, %v513
        %v581 = vsel %vm528, 0.0, %v514
        %v582 = vsel %vm528, 0.0, %v515
        %v583 = vsel %vm528, 0.0, %v516
        %v584 = vsel %vm528, 0.0, %v517
        %v585 = vsel %vm528, 0.0, %v518
        %v586 = vsel %vm528, 0.0, %v519
        %v587 = vsel %vm528, 0.0, %v520
        %v588 = vsel %vm528, 0.0, %v521
        %v589 = vsel %vm528, 0.0, %v522
        %v590 = vsel %vm528, 0.0, %v523
        %v591 = vsel %vm528, 0.0, %v524
        %v592 = vsel %vm528, 0.0, %v525
        %v593 = vadd.f32 %v529, %v397
        %v594 = vadd.f32 %v530, %v398
        %v595 = vadd.f32 %v531, %v399
        %v596 = vadd.f32 %v532, %v400
        %v597 = vadd.f32 %v533, %v401
        %v598 = vadd.f32 %v534, %v402
        %v599 = vadd.f32 %v535, %v403
        %v600 = vadd.f32 %v536, %v404
        %v601 = vadd.f32 %v537, %v405
        %v602 = vadd.f32 %v538, %v406
        %v603 = vadd.f32 %v539, %v407
        %v604 = vadd.f32 %v540, %v408
        %v605 = vadd.f32 %v541, %v409
        %v606 = vadd.f32 %v542, %v410
        %v607 = vadd.f32 %v543, %v411
        %v608 = vadd.f32 %v544, %v412
        %v609 = vadd.f32 %v545, %v413
        %v610 = vadd.f32 %v546, %v414
        %v611 = vadd.f32 %v547, %v415
        %v612 = vadd.f32 %v548, %v416
        %v613 = vadd.f32 %v549, %v417
        %v614 = vadd.f32 %v550, %v418
        %v615 = vadd.f32 %v551, %v419
        %v616 = vadd.f32 %v552, %v420
        %v617 = vadd.f32 %v553, %v421
        %v618 = vadd.f32 %v554, %v422
        %v619 = vadd.f32 %v555, %v423
        %v620 = vadd.f32 %v556, %v424
        %v621 = vadd.f32 %v557, %v425
        %v622 = vadd.f32 %v558, %v426
        %v623 = vadd.f32 %v559, %v427
        %v624 = vadd.f32 %v560, %v428
        %v625 = vadd.f32 %v561, %v429
        %v626 = vadd.f32 %v562, %v430
        %v627 = vadd.f32 %v563, %v431
        %v628 = vadd.f32 %v564, %v432
        %v629 = vadd.f32 %v565, %v433
        %v630 = vadd.f32 %v566, %v434
        %v631 = vadd.f32 %v567, %v435
        %v632 = vadd.f32 %v568, %v436
        %v633 = vadd.f32 %v569, %v437
        %v634 = vadd.f32 %v570, %v438
        %v635 = vadd.f32 %v571, %v439
        %v636 = vadd.f32 %v572, %v440
        %v637 = vadd.f32 %v573, %v441
        %v638 = vadd.f32 %v574, %v442
        %v639 = vadd.f32 %v575, %v443
        %v640 = vadd.f32 %v576, %v444
        %v641 = vadd.f32 %v577, %v445
        %v642 = vadd.f32 %v578, %v446
        %v643 = vadd.f32 %v579, %v447
        %v644 = vadd.f32 %v580, %v448
        %v645 = vadd.f32 %v581, %v449
        %v646 = vadd.f32 %v582, %v450
        %v647 = vadd.f32 %v583, %v451
        %v648 = vadd.f32 %v584, %v452
        %v649 = vadd.f32 %v585, %v453
        %v650 = vadd.f32 %v586, %v454
        %v651 = vadd.f32 %v587, %v455
        %v652 = vadd.f32 %v588, %v456
        %v653 = vadd.f32 %v589, %v457
        %v654 = vadd.f32 %v590, %v458
        %v655 = vadd.f32 %v591, %v459
        %v656 = vadd.f32 %v592, %v460
        %vm657 = vcmp.ge.f32.partialorder %v593, 1.0
        %vm658 = vcmp.ge.f32.partialorder %v594, 1.0
        %vm659 = vcmp.ge.f32.partialorder %v595, 1.0
        %vm660 = vcmp.ge.f32.partialorder %v596, 1.0
        %vm661 = vcmp.ge.f32.partialorder %v597, 1.0
        %vm662 = vcmp.ge.f32.partialorder %v598, 1.0
        %vm663 = vcmp.ge.f32.partialorder %v599, 1.0
        %vm664 = vcmp.ge.f32.partialorder %v600, 1.0
        %vm665 = vcmp.ge.f32.partialorder %v601, 1.0
        %vm666 = vcmp.ge.f32.partialorder %v602, 1.0
        %vm667 = vcmp.ge.f32.partialorder %v603, 1.0
        %vm668 = vcmp.ge.f32.partialorder %v604, 1.0
        %vm669 = vcmp.ge.f32.partialorder %v605, 1.0
        %vm670 = vcmp.ge.f32.partialorder %v606, 1.0
        %vm671 = vcmp.ge.f32.partialorder %v607, 1.0
        %vm672 = vcmp.ge.f32.partialorder %v608, 1.0
        %vm673 = vcmp.ge.f32.partialorder %v609, 1.0
        %vm674 = vcmp.ge.f32.partialorder %v610, 1.0
        %vm675 = vcmp.ge.f32.partialorder %v611, 1.0
        %vm676 = vcmp.ge.f32.partialorder %v612, 1.0
        %vm677 = vcmp.ge.f32.partialorder %v613, 1.0
        %vm678 = vcmp.ge.f32.partialorder %v614, 1.0
        %vm679 = vcmp.ge.f32.partialorder %v615, 1.0
        %vm680 = vcmp.ge.f32.partialorder %v616, 1.0
        %vm681 = vcmp.ge.f32.partialorder %v617, 1.0
        %vm682 = vcmp.ge.f32.partialorder %v618, 1.0
        %vm683 = vcmp.ge.f32.partialorder %v619, 1.0
        %vm684 = vcmp.ge.f32.partialorder %v620, 1.0
        %vm685 = vcmp.ge.f32.partialorder %v621, 1.0
        %vm686 = vcmp.ge.f32.partialorder %v622, 1.0
        %vm687 = vcmp.ge.f32.partialorder %v623, 1.0
        %vm688 = vcmp.ge.f32.partialorder %v624, 1.0
        %vm689 = vcmp.ge.f32.partialorder %v625, 1.0
        %vm690 = vcmp.ge.f32.partialorder %v626, 1.0
        %vm691 = vcmp.ge.f32.partialorder %v627, 1.0
        %vm692 = vcmp.ge.f32.partialorder %v628, 1.0
        %vm693 = vcmp.ge.f32.partialorder %v629, 1.0
        %vm694 = vcmp.ge.f32.partialorder %v630, 1.0
        %vm695 = vcmp.ge.f32.partialorder %v631, 1.0
        %vm696 = vcmp.ge.f32.partialorder %v632, 1.0
        %vm697 = vcmp.ge.f32.partialorder %v633, 1.0
        %vm698 = vcmp.ge.f32.partialorder %v634, 1.0
        %vm699 = vcmp.ge.f32.partialorder %v635, 1.0
        %vm700 = vcmp.ge.f32.partialorder %v636, 1.0
        %vm701 = vcmp.ge.f32.partialorder %v637, 1.0
        %vm702 = vcmp.ge.f32.partialorder %v638, 1.0
        %vm703 = vcmp.ge.f32.partialorder %v639, 1.0
        %vm704 = vcmp.ge.f32.partialorder %v640, 1.0
        %vm705 = vcmp.ge.f32.partialorder %v641, 1.0
        %vm706 = vcmp.ge.f32.partialorder %v642, 1.0
        %vm707 = vcmp.ge.f32.partialorder %v643, 1.0
        %vm708 = vcmp.ge.f32.partialorder %v644, 1.0
        %vm709 = vcmp.ge.f32.partialorder %v645, 1.0
        %vm710 = vcmp.ge.f32.partialorder %v646, 1.0
        %vm711 = vcmp.ge.f32.partialorder %v647, 1.0
        %vm712 = vcmp.ge.f32.partialorder %v648, 1.0
        %vm713 = vcmp.ge.f32.partialorder %v649, 1.0
        %vm714 = vcmp.ge.f32.partialorder %v650, 1.0
        %vm715 = vcmp.ge.f32.partialorder %v651, 1.0
        %vm716 = vcmp.ge.f32.partialorder %v652, 1.0
        %vm717 = vcmp.ge.f32.partialorder %v653, 1.0
        %vm718 = vcmp.ge.f32.partialorder %v654, 1.0
        %vm719 = vcmp.ge.f32.partialorder %v655, 1.0
        %vm720 = vcmp.ge.f32.partialorder %v656, 1.0
        %v721 = vsel %vm657, 1, 0
        %v722 = vsel %vm658, 1, 0
        %v723 = vsel %vm659, 1, 0
        %v724 = vsel %vm660, 1, 0
        %v725 = vsel %vm661, 1, 0
        %v726 = vsel %vm662, 1, 0
        %v727 = vsel %vm663, 1, 0
        %v728 = vsel %vm664, 1, 0
        %v729 = vsel %vm665, 1, 0
        %v730 = vsel %vm666, 1, 0
        %v731 = vsel %vm667, 1, 0
        %v732 = vsel %vm668, 1, 0
        %v733 = vsel %vm669, 1, 0
        %v734 = vsel %vm670, 1, 0
        %v735 = vsel %vm671, 1, 0
        %v736 = vsel %vm672, 1, 0
        %v737 = vsel %vm673, 1, 0
        %v738 = vsel %vm674, 1, 0
        %v739 = vsel %vm675, 1, 0
        %v740 = vsel %vm676, 1, 0
        %v741 = vsel %vm677, 1, 0
        %v742 = vsel %vm678, 1, 0
        %v743 = vsel %vm679, 1, 0
        %v744 = vsel %vm680, 1, 0
        %v745 = vsel %vm681, 1, 0
        %v746 = vsel %vm682, 1, 0
        %v747 = vsel %vm683, 1, 0
        %v748 = vsel %vm684, 1, 0
        %v749 = vsel %vm685, 1, 0
        %v750 = vsel %vm686, 1, 0
        %v751 = vsel %vm687, 1, 0
        %v752 = vsel %vm688, 1, 0
        %v753 = vsel %vm689, 1, 0
        %v754 = vsel %vm690, 1, 0
        %v755 = vsel %vm691, 1, 0
        %v756 = vsel %vm692, 1, 0
        %v757 = vsel %vm693, 1, 0
        %v758 = vsel %vm694, 1, 0
        %v759 = vsel %vm695, 1, 0
        %v760 = vsel %vm696, 1, 0
        %v761 = vsel %vm697, 1, 0
        %v762 = vsel %vm698, 1, 0
        %v763 = vsel %vm699, 1, 0
        %v764 = vsel %vm700, 1, 0
        %v765 = vsel %vm701, 1, 0
        %v766 = vsel %vm702, 1, 0
        %v767 = vsel %vm703, 1, 0
        %v768 = vsel %vm704, 1, 0
        %v769 = vsel %vm705, 1, 0
        %v770 = vsel %vm706, 1, 0
        %v771 = vsel %vm707, 1, 0
        %v772 = vsel %vm708, 1, 0
        %v773 = vsel %vm709, 1, 0
        %v774 = vsel %vm710, 1, 0
        %v775 = vsel %vm711, 1, 0
        %v776 = vsel %vm712, 1, 0
        %v777 = vsel %vm713, 1, 0
        %v778 = vsel %vm714, 1, 0
        %v779 = vsel %vm715, 1, 0
        %v780 = vsel %vm716, 1, 0
        %v781 = vsel %vm717, 1, 0
        %v782 = vsel %vm718, 1, 0
        %v783 = vsel %vm719, 1, 0
        %v784 = vsel %vm720, 1, 0
        %v785 = vcvt.s32.f32 %v721
        %v786 = vcvt.s32.f32 %v722
        %v787 = vcvt.s32.f32 %v723
        %v788 = vcvt.s32.f32 %v724
        %v789 = vcvt.s32.f32 %v725
        %v790 = vcvt.s32.f32 %v726
        %v791 = vcvt.s32.f32 %v727
        %v792 = vcvt.s32.f32 %v728
        %v793 = vcvt.s32.f32 %v729
        %v794 = vcvt.s32.f32 %v730
        %v795 = vcvt.s32.f32 %v731
        %v796 = vcvt.s32.f32 %v732
        %v797 = vcvt.s32.f32 %v733
        %v798 = vcvt.s32.f32 %v734
        %v799 = vcvt.s32.f32 %v735
        %v800 = vcvt.s32.f32 %v736
        %v801 = vcvt.s32.f32 %v737
        %v802 = vcvt.s32.f32 %v738
        %v803 = vcvt.s32.f32 %v739
        %v804 = vcvt.s32.f32 %v740
        %v805 = vcvt.s32.f32 %v741
        %v806 = vcvt.s32.f32 %v742
        %v807 = vcvt.s32.f32 %v743
        %v808 = vcvt.s32.f32 %v744
        %v809 = vcvt.s32.f32 %v745
        %v810 = vcvt.s32.f32 %v746
        %v811 = vcvt.s32.f32 %v747
        %v812 = vcvt.s32.f32 %v748
        %v813 = vcvt.s32.f32 %v749
        %v814 = vcvt.s32.f32 %v750
        %v815 = vcvt.s32.f32 %v751
        %v816 = vcvt.s32.f32 %v752
        %v817 = vcvt.s32.f32 %v753
        %v818 = vcvt.s32.f32 %v754
        %v819 = vcvt.s32.f32 %v755
        %v820 = vcvt.s32.f32 %v756
        %v821 = vcvt.s32.f32 %v757
        %v822 = vcvt.s32.f32 %v758
        %v823 = vcvt.s32.f32 %v759
        %v824 = vcvt.s32.f32 %v760
        %v825 = vcvt.s32.f32 %v761
        %v826 = vcvt.s32.f32 %v762
        %v827 = vcvt.s32.f32 %v763
        %v828 = vcvt.s32.f32 %v764
        %v829 = vcvt.s32.f32 %v765
        %v830 = vcvt.s32.f32 %v766
        %v831 = vcvt.s32.f32 %v767
        %v832 = vcvt.s32.f32 %v768
        %v833 = vcvt.s32.f32 %v769
        %v834 = vcvt.s32.f32 %v770
        %v835 = vcvt.s32.f32 %v771
        %v836 = vcvt.s32.f32 %v772
        %v837 = vcvt.s32.f32 %v773
        %v838 = vcvt.s32.f32 %v774
        %v839 = vcvt.s32.f32 %v775
        %v840 = vcvt.s32.f32 %v776
        %v841 = vcvt.s32.f32 %v777
        %v842 = vcvt.s32.f32 %v778
        %v843 = vcvt.s32.f32 %v779
        %v844 = vcvt.s32.f32 %v780
        %v845 = vcvt.s32.f32 %v781
        %v846 = vcvt.s32.f32 %v782
        %v847 = vcvt.s32.f32 %v783
        %v848 = vcvt.s32.f32 %v784
        %v849 = vsub.f32 %v593, %v785
        %v850 = vsub.f32 %v594, %v786
        %v851 = vsub.f32 %v595, %v787
        %v852 = vsub.f32 %v596, %v788
        %v853 = vsub.f32 %v597, %v789
        %v854 = vsub.f32 %v598, %v790
        %v855 = vsub.f32 %v599, %v791
        %v856 = vsub.f32 %v600, %v792
        %v857 = vsub.f32 %v601, %v793
        %v858 = vsub.f32 %v602, %v794
        %v859 = vsub.f32 %v603, %v795
        %v860 = vsub.f32 %v604, %v796
        %v861 = vsub.f32 %v605, %v797
        %v862 = vsub.f32 %v606, %v798
        %v863 = vsub.f32 %v607, %v799
        %v864 = vsub.f32 %v608, %v800
        %v865 = vsub.f32 %v609, %v801
        %v866 = vsub.f32 %v610, %v802
        %v867 = vsub.f32 %v611, %v803
        %v868 = vsub.f32 %v612, %v804
        %v869 = vsub.f32 %v613, %v805
        %v870 = vsub.f32 %v614, %v806
        %v871 = vsub.f32 %v615, %v807
        %v872 = vsub.f32 %v616, %v808
        %v873 = vsub.f32 %v617, %v809
        %v874 = vsub.f32 %v618, %v810
        %v875 = vsub.f32 %v619, %v811
        %v876 = vsub.f32 %v620, %v812
        %v877 = vsub.f32 %v621, %v813
        %v878 = vsub.f32 %v622, %v814
        %v879 = vsub.f32 %v623, %v815
        %v880 = vsub.f32 %v624, %v816
        %v881 = vsub.f32 %v625, %v817
        %v882 = vsub.f32 %v626, %v818
        %v883 = vsub.f32 %v627, %v819
        %v884 = vsub.f32 %v628, %v820
        %v885 = vsub.f32 %v629, %v821
        %v886 = vsub.f32 %v630, %v822
        %v887 = vsub.f32 %v631, %v823
        %v888 = vsub.f32 %v632, %v824
        %v889 = vsub.f32 %v633, %v825
        %v890 = vsub.f32 %v634, %v826
        %v891 = vsub.f32 %v635, %v827
        %v892 = vsub.f32 %v636, %v828
        %v893 = vsub.f32 %v637, %v829
        %v894 = vsub.f32 %v638, %v830
        %v895 = vsub.f32 %v639, %v831
        %v896 = vsub.f32 %v640, %v832
        %v897 = vsub.f32 %v641, %v833
        %v898 = vsub.f32 %v642, %v834
        %v899 = vsub.f32 %v643, %v835
        %v900 = vsub.f32 %v644, %v836
        %v901 = vsub.f32 %v645, %v837
        %v902 = vsub.f32 %v646, %v838
        %v903 = vsub.f32 %v647, %v839
        %v904 = vsub.f32 %v648, %v840
        %v905 = vsub.f32 %v649, %v841
        %v906 = vsub.f32 %v650, %v842
        %v907 = vsub.f32 %v651, %v843
        %v908 = vsub.f32 %v652, %v844
        %v909 = vsub.f32 %v653, %v845
        %v910 = vsub.f32 %v654, %v846
        %v911 = vsub.f32 %v655, %v847
        %v912 = vsub.f32 %v656, %v848
        %913 = vst [vmem:[#allocation2] sm:$0xff] %v849
        %914 = vst [vmem:[#allocation2 + $0x8] sm:$0xff] %v850
        %915 = vst [vmem:[#allocation2 + $0x10] sm:$0xff] %v851
        %916 = vst [vmem:[#allocation2 + $0x18] sm:$0xff] %v852
        %917 = vst [vmem:[#allocation2 + $0x20] sm:$0xff] %v853
        %918 = vst [vmem:[#allocation2 + $0x28] sm:$0xff] %v854
        %919 = vst [vmem:[#allocation2 + $0x30] sm:$0xff] %v855
        %920 = vst [vmem:[#allocation2 + $0x38] sm:$0xff] %v856
        %921 = vst [vmem:[#allocation2 + $0x40] sm:$0xff] %v857
        %922 = vst [vmem:[#allocation2 + $0x48] sm:$0xff] %v858
        %923 = vst [vmem:[#allocation2 + $0x50] sm:$0xff] %v859
        %924 = vst [vmem:[#allocation2 + $0x58] sm:$0xff] %v860
        %925 = vst [vmem:[#allocation2 + $0x60] sm:$0xff] %v861
        %926 = vst [vmem:[#allocation2 + $0x68] sm:$0xff] %v862
        %927 = vst [vmem:[#allocation2 + $0x70] sm:$0xff] %v863
        %928 = vst [vmem:[#allocation2 + $0x78] sm:$0xff] %v864
        %929 = vst [vmem:[#allocation2 + $0x80] sm:$0xff] %v865
        %930 = vst [vmem:[#allocation2 + $0x88] sm:$0xff] %v866
        %931 = vst [vmem:[#allocation2 + $0x90] sm:$0xff] %v867
        %932 = vst [vmem:[#allocation2 + $0x98] sm:$0xff] %v868
        %933 = vst [vmem:[#allocation2 + $0xa0] sm:$0xff] %v869
        %934 = vst [vmem:[#allocation2 + $0xa8] sm:$0xff] %v870
        %935 = vst [vmem:[#allocation2 + $0xb0] sm:$0xff] %v871
        %936 = vst [vmem:[#allocation2 + $0xb8] sm:$0xff] %v872
        %937 = vst [vmem:[#allocation2 + $0xc0] sm:$0xff] %v873
        %938 = vst [vmem:[#allocation2 + $0xc8] sm:$0xff] %v874
        %939 = vst [vmem:[#allocation2 + $0xd0] sm:$0xff] %v875
        %940 = vst [vmem:[#allocation2 + $0xd8] sm:$0xff] %v876
        %941 = vst [vmem:[#allocation2 + $0xe0] sm:$0xff] %v877
        %942 = vst [vmem:[#allocation2 + $0xe8] sm:$0xff] %v878
        %943 = vst [vmem:[#allocation2 + $0xf0] sm:$0xff] %v879
        %944 = vst [vmem:[#allocation2 + $0xf8] sm:$0xff] %v880
        %945 = vst [vmem:[#allocation2 + $0x100] sm:$0xff] %v881
        %946 = vst [vmem:[#allocation2 + $0x108] sm:$0xff] %v882
        %947 = vst [vmem:[#allocation2 + $0x110] sm:$0xff] %v883
        %948 = vst [vmem:[#allocation2 + $0x118] sm:$0xff] %v884
        %949 = vst [vmem:[#allocation2 + $0x120] sm:$0xff] %v885
        %950 = vst [vmem:[#allocation2 + $0x128] sm:$0xff] %v886
        %951 = vst [vmem:[#allocation2 + $0x130] sm:$0xff] %v887
        %952 = vst [vmem:[#allocation2 + $0x138] sm:$0xff] %v888
        %953 = vst [vmem:[#allocation2 + $0x140] sm:$0xff] %v889
        %954 = vst [vmem:[#allocation2 + $0x148] sm:$0xff] %v890
        %955 = vst [vmem:[#allocation2 + $0x150] sm:$0xff] %v891
        %956 = vst [vmem:[#allocation2 + $0x158] sm:$0xff] %v892
        %957 = vst [vmem:[#allocation2 + $0x160] sm:$0xff] %v893
        %958 = vst [vmem:[#allocation2 + $0x168] sm:$0xff] %v894
        %959 = vst [vmem:[#allocation2 + $0x170] sm:$0xff] %v895
        %960 = vst [vmem:[#allocation2 + $0x178] sm:$0xff] %v896
        %961 = vst [vmem:[#allocation2 + $0x180] sm:$0xff] %v897
        %962 = vst [vmem:[#allocation2 + $0x188] sm:$0xff] %v898
        %963 = vst [vmem:[#allocation2 + $0x190] sm:$0xff] %v899
        %964 = vst [vmem:[#allocation2 + $0x198] sm:$0xff] %v900
        %965 = vst [vmem:[#allocation2 + $0x1a0] sm:$0xff] %v901
        %966 = vst [vmem:[#allocation2 + $0x1a8] sm:$0xff] %v902
        %967 = vst [vmem:[#allocation2 + $0x1b0] sm:$0xff] %v903
        %968 = vst [vmem:[#allocation2 + $0x1b8] sm:$0xff] %v904
        %969 = vst [vmem:[#allocation2 + $0x1c0] sm:$0xff] %v905
        %970 = vst [vmem:[#allocation2 + $0x1c8] sm:$0xff] %v906
        %971 = vst [vmem:[#allocation2 + $0x1d0] sm:$0xff] %v907
        %972 = vst [vmem:[#allocation2 + $0x1d8] sm:$0xff] %v908
        %973 = vst [vmem:[#allocation2 + $0x1e0] sm:$0xff] %v909
        %974 = vst [vmem:[#allocation2 + $0x1e8] sm:$0xff] %v910
        %975 = vst [vmem:[#allocation2 + $0x1f0] sm:$0xff] %v911
        %976 = vst [vmem:[#allocation2 + $0x1f8] sm:$0xff] %v912
        %v977 = vpack.c.bf16 %v786, %v785
        %v978 = vpack.c.bf16 %v788, %v787
        %v979 = vpack.c.bf16 %v790, %v789
        %v980 = vpack.c.bf16 %v792, %v791
        %v981 = vpack.c.bf16 %v794, %v793
        %v982 = vpack.c.bf16 %v796, %v795
        %v983 = vpack.c.bf16 %v798, %v797
        %v984 = vpack.c.bf16 %v800, %v799
        %v985 = vpack.c.bf16 %v802, %v801
        %v986 = vpack.c.bf16 %v804, %v803
        %v987 = vpack.c.bf16 %v806, %v805
        %v988 = vpack.c.bf16 %v808, %v807
        %v989 = vpack.c.bf16 %v810, %v809
        %v990 = vpack.c.bf16 %v812, %v811
        %v991 = vpack.c.bf16 %v814, %v813
        %v992 = vpack.c.bf16 %v816, %v815
        %v993 = vpack.c.bf16 %v818, %v817
        %v994 = vpack.c.bf16 %v820, %v819
        %v995 = vpack.c.bf16 %v822, %v821
        %v996 = vpack.c.bf16 %v824, %v823
        %v997 = vpack.c.bf16 %v826, %v825
        %v998 = vpack.c.bf16 %v828, %v827
        %v999 = vpack.c.bf16 %v830, %v829
        %v1000 = vpack.c.bf16 %v832, %v831
        %v1001 = vpack.c.bf16 %v834, %v833
        %v1002 = vpack.c.bf16 %v836, %v835
        %v1003 = vpack.c.bf16 %v838, %v837
        %v1004 = vpack.c.bf16 %v840, %v839
        %v1005 = vpack.c.bf16 %v842, %v841
        %v1006 = vpack.c.bf16 %v844, %v843
        %v1007 = vpack.c.bf16 %v846, %v845
        %v1008 = vpack.c.bf16 %v848, %v847
        %v1041 = vunpack.c.l.b16 %v977
        %v1042 = vunpack.c.h.b16 %v977
        %v1043 = vunpack.c.l.b16 %v978
        %v1044 = vunpack.c.h.b16 %v978
        %v1045 = vunpack.c.l.b16 %v979
        %v1046 = vunpack.c.h.b16 %v979
        %v1047 = vunpack.c.l.b16 %v980
        %v1048 = vunpack.c.h.b16 %v980
        %v1049 = vunpack.c.l.b16 %v981
        %v1050 = vunpack.c.h.b16 %v981
        %v1051 = vunpack.c.l.b16 %v982
        %v1052 = vunpack.c.h.b16 %v982
        %v1053 = vunpack.c.l.b16 %v983
        %v1054 = vunpack.c.h.b16 %v983
        %v1055 = vunpack.c.l.b16 %v984
        %v1056 = vunpack.c.h.b16 %v984
        %v1057 = vunpack.c.l.b16 %v985
        %v1058 = vunpack.c.h.b16 %v985
        %v1059 = vunpack.c.l.b16 %v986
        %v1060 = vunpack.c.h.b16 %v986
        %v1061 = vunpack.c.l.b16 %v987
        %v1062 = vunpack.c.h.b16 %v987
        %v1063 = vunpack.c.l.b16 %v988
        %v1064 = vunpack.c.h.b16 %v988
        %v1065 = vunpack.c.l.b16 %v989
        %v1066 = vunpack.c.h.b16 %v989
        %v1067 = vunpack.c.l.b16 %v990
        %v1068 = vunpack.c.h.b16 %v990
        %v1069 = vunpack.c.l.b16 %v991
        %v1070 = vunpack.c.h.b16 %v991
        %v1071 = vunpack.c.l.b16 %v992
        %v1072 = vunpack.c.h.b16 %v992
        %v1073 = vunpack.c.l.b16 %v993
        %v1074 = vunpack.c.h.b16 %v993
        %v1075 = vunpack.c.l.b16 %v994
        %v1076 = vunpack.c.h.b16 %v994
        %v1077 = vunpack.c.l.b16 %v995
        %v1078 = vunpack.c.h.b16 %v995
        %v1079 = vunpack.c.l.b16 %v996
        %v1080 = vunpack.c.h.b16 %v996
        %v1081 = vunpack.c.l.b16 %v997
        %v1082 = vunpack.c.h.b16 %v997
        %v1083 = vunpack.c.l.b16 %v998
        %v1084 = vunpack.c.h.b16 %v998
        %v1085 = vunpack.c.l.b16 %v999
        %v1086 = vunpack.c.h.b16 %v999
        %v1087 = vunpack.c.l.b16 %v1000
        %v1088 = vunpack.c.h.b16 %v1000
        %v1089 = vunpack.c.l.b16 %v1001
        %v1090 = vunpack.c.h.b16 %v1001
        %v1091 = vunpack.c.l.b16 %v1002
        %v1092 = vunpack.c.h.b16 %v1002
        %v1093 = vunpack.c.l.b16 %v1003
        %v1094 = vunpack.c.h.b16 %v1003
        %v1095 = vunpack.c.l.b16 %v1004
        %v1096 = vunpack.c.h.b16 %v1004
        %v1097 = vunpack.c.l.b16 %v1005
        %v1098 = vunpack.c.h.b16 %v1005
        %v1099 = vunpack.c.l.b16 %v1006
        %v1100 = vunpack.c.h.b16 %v1006
        %v1101 = vunpack.c.l.b16 %v1007
        %v1102 = vunpack.c.h.b16 %v1007
        %v1103 = vunpack.c.l.b16 %v1008
        %v1104 = vunpack.c.h.b16 %v1008
        %v1105 = vpack.c.b16 %v1041, %v1041
        %v1106 = vpack.c.b16 %v1042, %v1042
        %v1107 = vpack.c.b16 %v1043, %v1043
        %v1108 = vpack.c.b16 %v1044, %v1044
        %v1109 = vpack.c.b16 %v1045, %v1045
        %v1110 = vpack.c.b16 %v1046, %v1046
        %v1111 = vpack.c.b16 %v1047, %v1047
        %v1112 = vpack.c.b16 %v1048, %v1048
        %v1113 = vpack.c.b16 %v1049, %v1049
        %v1114 = vpack.c.b16 %v1050, %v1050
        %v1115 = vpack.c.b16 %v1051, %v1051
        %v1116 = vpack.c.b16 %v1052, %v1052
        %v1117 = vpack.c.b16 %v1053, %v1053
        %v1118 = vpack.c.b16 %v1054, %v1054
        %v1119 = vpack.c.b16 %v1055, %v1055
        %v1120 = vpack.c.b16 %v1056, %v1056
        %v1121 = vpack.c.b16 %v1057, %v1057
        %v1122 = vpack.c.b16 %v1058, %v1058
        %v1123 = vpack.c.b16 %v1059, %v1059
        %v1124 = vpack.c.b16 %v1060, %v1060
        %v1125 = vpack.c.b16 %v1061, %v1061
        %v1126 = vpack.c.b16 %v1062, %v1062
        %v1127 = vpack.c.b16 %v1063, %v1063
        %v1128 = vpack.c.b16 %v1064, %v1064
        %v1129 = vpack.c.b16 %v1065, %v1065
        %v1130 = vpack.c.b16 %v1066, %v1066
        %v1131 = vpack.c.b16 %v1067, %v1067
        %v1132 = vpack.c.b16 %v1068, %v1068
        %v1133 = vpack.c.b16 %v1069, %v1069
        %v1134 = vpack.c.b16 %v1070, %v1070
        %v1135 = vpack.c.b16 %v1071, %v1071
        %v1136 = vpack.c.b16 %v1072, %v1072
        %v1137 = vpack.c.b16 %v1073, %v1073
        %v1138 = vpack.c.b16 %v1074, %v1074
        %v1139 = vpack.c.b16 %v1075, %v1075
        %v1140 = vpack.c.b16 %v1076, %v1076
        %v1141 = vpack.c.b16 %v1077, %v1077
        %v1142 = vpack.c.b16 %v1078, %v1078
        %v1143 = vpack.c.b16 %v1079, %v1079
        %v1144 = vpack.c.b16 %v1080, %v1080
        %v1145 = vpack.c.b16 %v1081, %v1081
        %v1146 = vpack.c.b16 %v1082, %v1082
        %v1147 = vpack.c.b16 %v1083, %v1083
        %v1148 = vpack.c.b16 %v1084, %v1084
        %v1149 = vpack.c.b16 %v1085, %v1085
        %v1150 = vpack.c.b16 %v1086, %v1086
        %v1151 = vpack.c.b16 %v1087, %v1087
        %v1152 = vpack.c.b16 %v1088, %v1088
        %v1153 = vpack.c.b16 %v1089, %v1089
        %v1154 = vpack.c.b16 %v1090, %v1090
        %v1155 = vpack.c.b16 %v1091, %v1091
        %v1156 = vpack.c.b16 %v1092, %v1092
        %v1157 = vpack.c.b16 %v1093, %v1093
        %v1158 = vpack.c.b16 %v1094, %v1094
        %v1159 = vpack.c.b16 %v1095, %v1095
        %v1160 = vpack.c.b16 %v1096, %v1096
        %v1161 = vpack.c.b16 %v1097, %v1097
        %v1162 = vpack.c.b16 %v1098, %v1098
        %v1163 = vpack.c.b16 %v1099, %v1099
        %v1164 = vpack.c.b16 %v1100, %v1100
        %v1165 = vpack.c.b16 %v1101, %v1101
        %v1166 = vpack.c.b16 %v1102, %v1102
        %v1167 = vpack.c.b16 %v1103, %v1103
        %v1168 = vpack.c.b16 %v1104, %v1104
        %1233 = vst [vmem:[%s249] sm:$0xf] %v1105
        %1234 = vst [vmem:[%s249 + $0x4] sm:$0xf] %v1106
        %1235 = vst [vmem:[%s249 + $0x8] sm:$0xf] %v1107
        %1236 = vst [vmem:[%s249 + $0xc] sm:$0xf] %v1108
        %1237 = vst [vmem:[%s249 + $0x10] sm:$0xf] %v1109
        %1238 = vst [vmem:[%s249 + $0x14] sm:$0xf] %v1110
        %1239 = vst [vmem:[%s249 + $0x18] sm:$0xf] %v1111
        %1240 = vst [vmem:[%s249 + $0x1c] sm:$0xf] %v1112
        %1241 = vst [vmem:[%s249 + $0x20] sm:$0xf] %v1113
        %1242 = vst [vmem:[%s249 + $0x24] sm:$0xf] %v1114
        %1243 = vst [vmem:[%s249 + $0x28] sm:$0xf] %v1115
        %1244 = vst [vmem:[%s249 + $0x2c] sm:$0xf] %v1116
        %1245 = vst [vmem:[%s249 + $0x30] sm:$0xf] %v1117
        %1246 = vst [vmem:[%s249 + $0x34] sm:$0xf] %v1118
        %1247 = vst [vmem:[%s249 + $0x38] sm:$0xf] %v1119
        %1248 = vst [vmem:[%s249 + $0x3c] sm:$0xf] %v1120
        %1249 = vst [vmem:[%s249 + $0x40] sm:$0xf] %v1121
        %1250 = vst [vmem:[%s249 + $0x44] sm:$0xf] %v1122
        %1251 = vst [vmem:[%s249 + $0x48] sm:$0xf] %v1123
        %1252 = vst [vmem:[%s249 + $0x4c] sm:$0xf] %v1124
        %1253 = vst [vmem:[%s249 + $0x50] sm:$0xf] %v1125
        %1254 = vst [vmem:[%s249 + $0x54] sm:$0xf] %v1126
        %1255 = vst [vmem:[%s249 + $0x58] sm:$0xf] %v1127
        %1256 = vst [vmem:[%s249 + $0x5c] sm:$0xf] %v1128
        %1257 = vst [vmem:[%s249 + $0x60] sm:$0xf] %v1129
        %1258 = vst [vmem:[%s249 + $0x64] sm:$0xf] %v1130
        %1259 = vst [vmem:[%s249 + $0x68] sm:$0xf] %v1131
        %1260 = vst [vmem:[%s249 + $0x6c] sm:$0xf] %v1132
        %1261 = vst [vmem:[%s249 + $0x70] sm:$0xf] %v1133
        %1262 = vst [vmem:[%s249 + $0x74] sm:$0xf] %v1134
        %1263 = vst [vmem:[%s249 + $0x78] sm:$0xf] %v1135
        %1264 = vst [vmem:[%s249 + $0x7c] sm:$0xf] %v1136
        %1265 = vst [vmem:[%s249 + $0x80] sm:$0xf] %v1137
        %1266 = vst [vmem:[%s249 + $0x84] sm:$0xf] %v1138
        %1267 = vst [vmem:[%s249 + $0x88] sm:$0xf] %v1139
        %1268 = vst [vmem:[%s249 + $0x8c] sm:$0xf] %v1140
        %1269 = vst [vmem:[%s249 + $0x90] sm:$0xf] %v1141
        %1270 = vst [vmem:[%s249 + $0x94] sm:$0xf] %v1142
        %1271 = vst [vmem:[%s249 + $0x98] sm:$0xf] %v1143
        %1272 = vst [vmem:[%s249 + $0x9c] sm:$0xf] %v1144
        %1273 = vst [vmem:[%s249 + $0xa0] sm:$0xf] %v1145
        %1274 = vst [vmem:[%s249 + $0xa4] sm:$0xf] %v1146
        %1275 = vst [vmem:[%s249 + $0xa8] sm:$0xf] %v1147
        %1276 = vst [vmem:[%s249 + $0xac] sm:$0xf] %v1148
        %1277 = vst [vmem:[%s249 + $0xb0] sm:$0xf] %v1149
        %1278 = vst [vmem:[%s249 + $0xb4] sm:$0xf] %v1150
        %1279 = vst [vmem:[%s249 + $0xb8] sm:$0xf] %v1151
        %1280 = vst [vmem:[%s249 + $0xbc] sm:$0xf] %v1152
        %1281 = vst [vmem:[%s249 + $0xc0] sm:$0xf] %v1153
        %1282 = vst [vmem:[%s249 + $0xc4] sm:$0xf] %v1154
        %1283 = vst [vmem:[%s249 + $0xc8] sm:$0xf] %v1155
        %1284 = vst [vmem:[%s249 + $0xcc] sm:$0xf] %v1156
        %1285 = vst [vmem:[%s249 + $0xd0] sm:$0xf] %v1157
        %1286 = vst [vmem:[%s249 + $0xd4] sm:$0xf] %v1158
        %1287 = vst [vmem:[%s249 + $0xd8] sm:$0xf] %v1159
        %1288 = vst [vmem:[%s249 + $0xdc] sm:$0xf] %v1160
        %1289 = vst [vmem:[%s249 + $0xe0] sm:$0xf] %v1161
        %1290 = vst [vmem:[%s249 + $0xe4] sm:$0xf] %v1162
        %1291 = vst [vmem:[%s249 + $0xe8] sm:$0xf] %v1163
        %1292 = vst [vmem:[%s249 + $0xec] sm:$0xf] %v1164
        %1293 = vst [vmem:[%s249 + $0xf0] sm:$0xf] %v1165
        %1294 = vst [vmem:[%s249 + $0xf4] sm:$0xf] %v1166
        %1295 = vst [vmem:[%s249 + $0xf8] sm:$0xf] %v1167
        %1296 = vst [vmem:[%s249 + $0xfc] sm:$0xf] %v1168
        %s1297 = sand.u32 %s134, 1
        %s1298 = scalar_lea.sflag [#allocation5], %s1297
        %s1299 = sand.u32 %s134, 1
        %s1300 = smul.addr %s1299, 256
        %s1301 = scalar_lea.vmem [#allocation8], %s1300
        // Predicated region
        $region41: #{tpu_custom_call.1} parent=31 // pred_check
          %p1302 = pneg %p144
        $region42: #{tpu_custom_call.1} parent=31 // pred_check_branch
          %1304 = sbr.rel (%p1302) target = $region44
        $region43: #{tpu_custom_call.1} parent=31 // pred_region
          %s1305 = smul.u32 64, %s26
          %s1307 = ssub.s32 4096, 4096
          %1308 = vsyncadd %s1298, %s1307
          %s1309 = sadd.s32 %s27, %s1305
          %s1310 = smul.addr %s28, 64
          %s1311 = sadd.s32 %s1309, %s1310
          %s1312 = smul.addr %s1311, 64
          %s1313 = scalar_lea.hbm %s3, %s1312
          %s1314 = sshll.u32 %s1301, 4
          %s1315 = int_to_ptr.vmem [resolvable:$true] %s1314
          %1320 = dma.vmem_to_hbm [thread:$0]  %s1315, 4096, %s1313, %s1298, 64, 64, 4
        $region44: #{tpu_custom_call.1} parent=31 // pred_fallthru
          _
      $region32: #{tpu_custom_call.1} parent=5 // pred_fallthru
        _
      %p1321 = scmp.le.s32.totalorder 2, %s16
      // Predicated region
      $region45: #{tpu_custom_call.1} parent=5 // pred_check
        %p1322 = pneg %p1321
      $region46: #{tpu_custom_call.1} parent=5 // pred_check_branch
        %1324 = sbr.rel (%p1322) target = $region48
      $region47: #{tpu_custom_call.1} parent=5 // pred_region
        %s1325 = ssub.s32 %s16, 2
        // Predicated region
        $region49: #{tpu_custom_call.1} parent=47 // pred_check
          %p1326 = pneg %p150
        $region50: #{tpu_custom_call.1} parent=47 // pred_check_branch
          %1328 = sbr.rel (%p1326) target = $region52
        $region51: #{tpu_custom_call.1} parent=47 // pred_region
          %s1329 = sand.u32 %s135, 1
          %s1330 = scalar_lea.sflag [#allocation5], %s1329
          %s1331 = sand.u32 %s135, 1
          %s1332 = smul.addr %s1331, 256
          %s1333 = scalar_lea.vmem [#allocation8], %s1332
          %1334 = dma.done %s1330, 4096
        $region52: #{tpu_custom_call.1} parent=47 // pred_fallthru
          _
      $region48: #{tpu_custom_call.1} parent=5 // pred_fallthru
        _
    $region6: #{tpu_custom_call.1} parent=1 // loop_footer
      %s20 = sadd.s32 1, %s16
    $region7: #{tpu_custom_call.1} parent=1 // loop_footer_branch
      %15 = sbr.rel target = $region3
    $region8: #{tpu_custom_call.1} parent=1 // loop_exit
      _
    %1335 = vsyncpa [#allocation4], 1
    %s1336 = scalar_lea.sflag [#allocation4], 1
    %1337 = vsyncpa %s1336, 1
    %1338 = vsyncpa [#allocation7], 1
    %s1339 = scalar_lea.sflag [#allocation7], 1
    %1340 = vsyncpa %s1339, 1
    %1341 = vsyncpa [#allocation5], 1
    %s1342 = scalar_lea.sflag [#allocation5], 1
    %1343 = vsyncpa %s1342, 1

</llo_original>
